<compile_context>
chip_gen: v7x
topology: tpu7x:2x2x1
jax: 0.10.0
libtpu: 0.0.40
codegen_flags: <defaults>
</compile_context>

<pallas_src>
import functools
import math

import jax
import jax.numpy as jnp
import numpy as np
from jax.experimental import pallas as pl
from jax.experimental.pallas import tpu as pltpu

DIM_H = 32
NUM_HEADS = 4
NUM_SIDES = 1
SEQ = 8
BATCH = 2
LN_EPS = 1e-5  # PyTorch nn.LayerNorm default


def _layer_norm(x, gamma, beta, eps=LN_EPS):
    mean = jnp.mean(x, axis=-1, keepdims=True)
    var = jnp.mean((x - mean) ** 2, axis=-1, keepdims=True)
    return (x - mean) * jax.lax.rsqrt(var + eps) * gamma + beta


def _gelu_exact(x):
    return x * 0.5 * (1.0 + jax.lax.erf(x / math.sqrt(2.0)))


def decoupled_block_kernel(
    act_ref,   # ((1+Ns)*BS, H)        rows [0:BS]=id, [(1+s)*BS:(2+s)*BS]=side s
    w_ref,     # ((4+Ns)*H, 3H)        wqkv | wsqk[s] | wo | w1 | w2 (row blocks)
    b_ref,     # (mask_row0+BS, WB)    bqkv, bsqk[s], bo, b1, b2, 4 LN rows, pad, mask
    out_ref,   # (BS, H)
    *, B, S, H, nh, Ns, mask_row0,
):
    BS = B * S
    dh = H // nh
    NT = (((1,), (1,)), ((), ()))   # contract last dims of both operands (q @ k.T)

    x = act_ref[0:BS, :].astype(jnp.float32)                           # (BS, H)
    add_mask = b_ref[mask_row0:mask_row0 + BS, 0:BS]                   # (BS, BS) 0/-1e30

    # --- fused Q|K|V projection for id: one wide MXU push (H -> 3H), scale pre-folded ---
    qkv = jnp.dot(x, w_ref[0:H, 0:3 * H],
                  preferred_element_type=jnp.float32) + b_ref[0:1, 0:3 * H]
    q = qkv[:, 0:H]
    k = qkv[:, H:2 * H]
    v = qkv[:, 2 * H:3 * H]

    # --- fused Q|K projection per side (no transposes) ---
    side_q, side_k = [], []
    for s in range(Ns):
        xs = act_ref[(1 + s) * BS:(2 + s) * BS, :].astype(jnp.float32)
        r0 = (1 + s) * H
        sqk = jnp.dot(xs, w_ref[r0:r0 + H, 0:2 * H],
                      preferred_element_type=jnp.float32) + b_ref[1 + s:2 + s, 0:2 * H]
        side_q.append(sqk[:, 0:H])
        side_k.append(sqk[:, H:2 * H])

    def masked_softmax(sc):
        sc = sc + add_mask                       # additive block-diagonal batch mask
        m = jnp.max(sc, axis=-1, keepdims=True)
        e = jnp.exp(sc - m)
        return e * pl.reciprocal(jnp.sum(e, axis=-1, keepdims=True), approx=True)

    wo_r0 = (1 + Ns) * H
    w1_r0 = (2 + Ns) * H
    w2_r0 = (3 + Ns) * H

    # --- per-head attention (both batches at once) with max-fusion over {id, sides};
    #     fc_o folded in:  sum_h (P_h @ V_h) @ Wo[h*dh:(h+1)*dh, :]  ---
    # TODO(synk): optional attention mask (masked_fill with -1e8) not exercised (mask=None).
    mha_acc = jnp.zeros((BS, H), jnp.float32)
    for h in range(nh):
        sl = slice(h * dh, (h + 1) * dh)
        fused = masked_softmax(
            jax.lax.dot_general(q[:, sl], k[:, sl], dimension_numbers=NT,
                                preferred_element_type=jnp.float32))
        for s in range(Ns):
            a_s = masked_softmax(
                jax.lax.dot_general(side_q[s][:, sl], side_k[s][:, sl],
                                    dimension_numbers=NT,
                                    preferred_element_type=jnp.float32))
            fused = jnp.maximum(fused, a_s)
        o_h = jnp.dot(fused, v[:, sl], preferred_element_type=jnp.float32)   # (BS, dh)
        mha_acc = mha_acc + jnp.dot(o_h, w_ref[wo_r0 + h * dh:wo_r0 + (h + 1) * dh, 0:H],
                                    preferred_element_type=jnp.float32)

    bi = 1 + Ns
    bo       = b_ref[bi + 0:bi + 1, 0:H]
    b1       = b_ref[bi + 1:bi + 2, 0:H]
    b2       = b_ref[bi + 2:bi + 3, 0:H]
    g_mha    = b_ref[bi + 3:bi + 4, 0:H]
    beta_mha = b_ref[bi + 4:bi + 5, 0:H]
    g_ff     = b_ref[bi + 5:bi + 6, 0:H]
    beta_ff  = b_ref[bi + 6:bi + 7, 0:H]

    # fc_o bias + residual, post-LN   (dropout_ratio = 0 -> identity)
    mha = _layer_norm(x + mha_acc + bo, g_mha, beta_mha)

    # FF: fc1 -> exact GELU -> fc2 -> + residual, then post-LN
    h1 = _gelu_exact(jnp.dot(mha, w_ref[w1_r0:w1_r0 + H, 0:H],
                             preferred_element_type=jnp.float32) + b1)
    h2 = jnp.dot(h1, w_ref[w2_r0:w2_r0 + H, 0:H],
                 preferred_element_type=jnp.float32) + b2
    out = _layer_norm(mha + h2, g_ff, beta_ff)

    out_ref[...] = out.astype(out_ref.dtype)


def decoupled_block(id_x, side_x, params):
    B, S, H = id_x.shape
    Ns = side_x.shape[2]
    nh = NUM_HEADS
    dh = H // nh
    BS = B * S
    scale = 1.0 / math.sqrt(H)

    # --- activation slab: batch folded into sublanes, sides appended below id ---
    id2 = id_x.reshape(BS, H)
    side2 = jnp.transpose(side_x, (2, 0, 1, 3)).reshape(Ns * BS, H)
    acts = jnp.concatenate([id2, side2], axis=0)                       # ((1+Ns)*BS, H)

    # --- weight slab (rows, 3H): wqkv | wsqk[s] | wo | w1 | w2 ---
    WW = 3 * H
    padw = lambda a: jnp.pad(a, ((0, 0), (0, WW - a.shape[1])))
    wblocks = [padw(jnp.concatenate([params['wq'] * scale, params['wk'], params['wv']], axis=1))]
    for s in range(Ns):
        wblocks.append(padw(jnp.concatenate([params['swq'][s] * scale, params['swk'][s]], axis=1)))
    wblocks += [padw(params['wo']), padw(params['w1']), padw(params['w2'])]
    wslab = jnp.concatenate(wblocks, axis=0)                            # ((4+Ns)*H, 3H)

    # --- bias / LN / mask slab (rows, max(3H, BS)) ---
    WB = max(3 * H, BS)
    padb = lambda a: jnp.pad(a, ((0, 0), (0, WB - a.shape[1])))
    brows = [padb(jnp.concatenate([params['bq'] * scale, params['bk'], params['bv']], axis=1))]
    for s in range(Ns):
        brows.append(padb(jnp.concatenate([params['sbq'][s] * scale, params['sbk'][s]], axis=1)))
    brows += [padb(params[k]) for k in
              ('bo', 'b1', 'b2', 'ln_mha_g', 'ln_mha_b', 'ln_ff_g', 'ln_ff_b')]
    n_bias_rows = len(brows)
    mask_row0 = ((n_bias_rows + 7) // 8) * 8                            # 8-row aligned
    if mask_row0 > n_bias_rows:
        brows.append(jnp.zeros((mask_row0 - n_bias_rows, WB), jnp.float32))
    # additive block-diagonal batch mask, built at trace time as a numpy constant
    bidx = np.arange(BS) // S
    mask_np = np.where(bidx[:, None] == bidx[None, :], 0.0, -1e30).astype(np.float32)
    brows.append(padb(jnp.asarray(mask_np)))
    bslab = jnp.concatenate(brows, axis=0)                              # (mask_row0+BS, WB)

    operands = (acts, wslab, bslab)

    # Advisory cost estimate so XLA can schedule around this tiny call.
    flops = (2 * BS * H * 3 * H                    # fused QKV
             + Ns * 2 * BS * H * 2 * H             # per-side fused Q|K
             + nh * (1 + Ns) * 2 * BS * BS * dh    # attention scores
             + nh * 2 * BS * BS * dh               # attention @ V
             + 3 * 2 * BS * H * H)                 # fc_o (folded), fc1, fc2
    transcendentals = nh * (1 + Ns) * BS * (BS + 1) + BS * H   # softmax exp+recip, GELU erf
    bytes_accessed = sum(int(a.size) * a.dtype.itemsize for a in operands) + BS * H * 4

    vmem = lambda: pl.BlockSpec(memory_space=pltpu.MemorySpace.VMEM)
    out2 = pl.pallas_call(
        functools.partial(decoupled_block_kernel,
                          B=B, S=S, H=H, nh=nh, Ns=Ns, mask_row0=mask_row0),
        out_shape=jax.ShapeDtypeStruct((BS, H), id_x.dtype),
        in_specs=[vmem() for _ in operands],
        out_specs=vmem(),
        cost_estimate=pl.CostEstimate(flops=flops,
                                      transcendentals=transcendentals,
                                      bytes_accessed=bytes_accessed),
    )(*operands)

    return out2.reshape(B, S, H)


def make_params(key, H, Ns):
    ks = jax.random.split(key, 16)
    s = 1.0 / math.sqrt(H)
    return {
        'wq': jax.random.normal(ks[0], (H, H), jnp.float32) * s,
        'bq': jax.random.normal(ks[1], (1, H), jnp.float32) * 0.01,
        'wk': jax.random.normal(ks[2], (H, H), jnp.float32) * s,
        'bk': jax.random.normal(ks[3], (1, H), jnp.float32) * 0.01,
        'wv': jax.random.normal(ks[4], (H, H), jnp.float32) * s,
        'bv': jax.random.normal(ks[5], (1, H), jnp.float32) * 0.01,
        'swq': jax.random.normal(ks[6], (Ns, H, H), jnp.float32) * s,
        'sbq': jax.random.normal(ks[7], (Ns, 1, H), jnp.float32) * 0.01,
        'swk': jax.random.normal(ks[8], (Ns, H, H), jnp.float32) * s,
        'sbk': jax.random.normal(ks[9], (Ns, 1, H), jnp.float32) * 0.01,
        'wo': jax.random.normal(ks[10], (H, H), jnp.float32) * s,
        'bo': jax.random.normal(ks[11], (1, H), jnp.float32) * 0.01,
        'ln_mha_g': jnp.ones((1, H), jnp.float32),
        'ln_mha_b': jnp.zeros((1, H), jnp.float32),
        'w1': jax.random.normal(ks[12], (H, H), jnp.float32) * s,
        'b1': jax.random.normal(ks[13], (1, H), jnp.float32) * 0.01,
        'w2': jax.random.normal(ks[14], (H, H), jnp.float32) * s,
        'b2': jax.random.normal(ks[15], (1, H), jnp.float32) * 0.01,
        'ln_ff_g': jnp.ones((1, H), jnp.float32),
        'ln_ff_b': jnp.zeros((1, H), jnp.float32),
    }


def reference(id_x, side_x, p):
    """Pure-JAX reference mirroring the PyTorch forward (pre_ln=False, dropout=0)."""
    B, S, H = id_x.shape
    Ns = side_x.shape[2]
    nh = NUM_HEADS
    dh = H // nh
    scale = 1.0 / math.sqrt(H)

    x = id_x
    q = (x @ p['wq'] + p['bq']).reshape(B, S, nh, dh)
    k = (x @ p['wk'] + p['bk']).reshape(B, S, nh, dh)
    v = (x @ p['wv'] + p['bv']).reshape(B, S, nh, dh)

    fused = jax.nn.softmax(jnp.einsum('bsnd,btnd->bnst', q, k) * scale, axis=-1)
    for s in range(Ns):
        xs = side_x[:, :, s, :]
        qs = (xs @ p['swq'][s] + p['sbq'][s]).reshape(B, S, nh, dh)
        ks = (xs @ p['swk'][s] + p['sbk'][s]).reshape(B, S, nh, dh)
        a_s = jax.nn.softmax(jnp.einsum('bsnd,btnd->bnst', qs, ks) * scale, axis=-1)
        fused = jnp.maximum(fused, a_s)

    o = jnp.einsum('bnst,btnd->bsnd', fused, v).reshape(B, S, H)
    mha_out = x + (o @ p['wo'] + p['bo'])
    mha_out = _layer_norm(mha_out, p['ln_mha_g'], p['ln_mha_b'])

    h1 = _gelu_exact(mha_out @ p['w1'] + p['b1'])
    h2 = h1 @ p['w2'] + p['b2']
    return _layer_norm(mha_out + h2, p['ln_ff_g'], p['ln_ff_b'])


if __name__ == "__main__":
    key = jax.random.PRNGKey(0)
    k_id, k_side, k_par = jax.random.split(key, 3)

    id_x = jax.random.normal(k_id, (BATCH, SEQ, DIM_H), jnp.float32)
    side_x = jax.random.normal(k_side, (BATCH, SEQ, NUM_SIDES, DIM_H), jnp.float32)
    params = make_params(k_par, DIM_H, NUM_SIDES)

    out = jax.block_until_ready(decoupled_block(id_x, side_x, params))
    ref = jax.block_until_ready(reference(id_x, side_x, params))
    np.testing.assert_allclose(np.asarray(out), np.asarray(ref), rtol=1e-2, atol=1e-2)

    print("KERNEL_OK")
</pallas_src>

<mosaic_0001>
module attributes {stable_mosaic.version = 11 : i64} {
  func.func @decoupled_block_kernel(%arg0: memref<32x32xf32, #tpu.memory_space<vmem>>, %arg1: memref<160x96xf32, #tpu.memory_space<vmem>>, %arg2: memref<32x96xf32, #tpu.memory_space<vmem>>, %arg3: memref<16x32xf32, #tpu.memory_space<vmem>>) attributes {dimension_semantics = [], scalar_prefetch = 0 : i64, scratch_operands = 0 : i64, tpu.core_type = #tpu.core_type<tc>} {
    %c0 = arith.constant 0 : index
    %c0_0 = arith.constant 0 : index
    %0 = vector.load %arg0[%c0, %c0_0] : memref<32x32xf32, #tpu.memory_space<vmem>>, vector<16x32xf32>
    %c16 = arith.constant 16 : index
    %c0_1 = arith.constant 0 : index
    %1 = vector.load %arg2[%c16, %c0_1] : memref<32x96xf32, #tpu.memory_space<vmem>>, vector<16x16xf32>
    %c0_2 = arith.constant 0 : index
    %c0_3 = arith.constant 0 : index
    %2 = vector.load %arg1[%c0_2, %c0_3] : memref<160x96xf32, #tpu.memory_space<vmem>>, vector<32x96xf32>
    %cst = arith.constant dense<0.000000e+00> : vector<16x96xf32>
    %3 = tpu.matmul %0, %2, %cst {dimension_numbers = #tpu.dot_dimension_numbers<[1], [0], [0], [1], [0, 0, 1, 1], [], []>} : vector<16x32xf32>, vector<32x96xf32>, vector<16x96xf32> -> vector<16x96xf32>
    %c0_4 = arith.constant 0 : index
    %c0_5 = arith.constant 0 : index
    %4 = vector.load %arg2[%c0_4, %c0_5] : memref<32x96xf32, #tpu.memory_space<vmem>>, vector<1x96xf32>
    %5 = vector.broadcast %4 : vector<1x96xf32> to vector<16x96xf32>
    %6 = arith.addf %3, %5 : vector<16x96xf32>
    %7 = vector.extract_strided_slice %6 {offsets = [0, 0], sizes = [16, 32], strides = [1, 1]} : vector<16x96xf32> to vector<16x32xf32>
    %8 = vector.extract_strided_slice %6 {offsets = [0, 32], sizes = [16, 32], strides = [1, 1]} : vector<16x96xf32> to vector<16x32xf32>
    %9 = vector.extract_strided_slice %6 {offsets = [0, 64], sizes = [16, 32], strides = [1, 1]} : vector<16x96xf32> to vector<16x32xf32>
    %c16_6 = arith.constant 16 : index
    %c0_7 = arith.constant 0 : index
    %10 = vector.load %arg0[%c16_6, %c0_7] : memref<32x32xf32, #tpu.memory_space<vmem>>, vector<16x32xf32>
    %c32 = arith.constant 32 : index
    %c0_8 = arith.constant 0 : index
    %11 = vector.load %arg1[%c32, %c0_8] : memref<160x96xf32, #tpu.memory_space<vmem>>, vector<32x64xf32>
    %cst_9 = arith.constant dense<0.000000e+00> : vector<16x64xf32>
    %12 = tpu.matmul %10, %11, %cst_9 {dimension_numbers = #tpu.dot_dimension_numbers<[1], [0], [0], [1], [0, 0, 1, 1], [], []>} : vector<16x32xf32>, vector<32x64xf32>, vector<16x64xf32> -> vector<16x64xf32>
    %c1 = arith.constant 1 : index
    %c0_10 = arith.constant 0 : index
    %13 = vector.load %arg2[%c1, %c0_10] : memref<32x96xf32, #tpu.memory_space<vmem>>, vector<1x64xf32>
    %14 = vector.broadcast %13 : vector<1x64xf32> to vector<16x64xf32>
    %15 = arith.addf %12, %14 : vector<16x64xf32>
    %16 = vector.extract_strided_slice %15 {offsets = [0, 0], sizes = [16, 32], strides = [1, 1]} : vector<16x64xf32> to vector<16x32xf32>
    %17 = vector.extract_strided_slice %15 {offsets = [0, 32], sizes = [16, 32], strides = [1, 1]} : vector<16x64xf32> to vector<16x32xf32>
    %cst_11 = arith.constant 0.000000e+00 : f32
    %18 = vector.broadcast %cst_11 : f32 to vector<16x32xf32>
    %19 = vector.extract_strided_slice %7 {offsets = [0, 0], sizes = [16, 8], strides = [1, 1]} : vector<16x32xf32> to vector<16x8xf32>
    %20 = vector.extract_strided_slice %8 {offsets = [0, 0], sizes = [16, 8], strides = [1, 1]} : vector<16x32xf32> to vector<16x8xf32>
    %cst_12 = arith.constant dense<0.000000e+00> : vector<16x16xf32>
    %21 = tpu.matmul %19, %20, %cst_12 {dimension_numbers = #tpu.dot_dimension_numbers<[1], [1], [0], [0], [0, 0, 1, 0], [], []>} : vector<16x8xf32>, vector<16x8xf32>, vector<16x16xf32> -> vector<16x16xf32>
    %22 = arith.addf %21, %1 : vector<16x16xf32>
    %cst_13 = arith.constant dense<0xFF800000> : vector<16xf32>
    %23 = vector.multi_reduction <maximumf>, %22, %cst_13 [1] : vector<16x16xf32> to vector<16xf32>
    %24 = vector.shape_cast %23 : vector<16xf32> to vector<16x1xf32>
    %25 = vector.broadcast %24 : vector<16x1xf32> to vector<16x16xf32>
    %26 = arith.subf %22, %25 : vector<16x16xf32>
    %27 = math.exp %26 : vector<16x16xf32>
    %cst_14 = arith.constant dense<0.000000e+00> : vector<16xf32>
    %28 = vector.multi_reduction <add>, %27, %cst_14 [1] : vector<16x16xf32> to vector<16xf32>
    %29 = vector.shape_cast %28 : vector<16xf32> to vector<16x1xf32>
    %30 = tpu.reciprocal %29 {approx = true} : vector<16x1xf32> -> vector<16x1xf32>
    %31 = vector.broadcast %30 : vector<16x1xf32> to vector<16x16xf32>
    %32 = arith.mulf %27, %31 : vector<16x16xf32>
    %33 = vector.extract_strided_slice %16 {offsets = [0, 0], sizes = [16, 8], strides = [1, 1]} : vector<16x32xf32> to vector<16x8xf32>
    %34 = vector.extract_strided_slice %17 {offsets = [0, 0], sizes = [16, 8], strides = [1, 1]} : vector<16x32xf32> to vector<16x8xf32>
    %cst_15 = arith.constant dense<0.000000e+00> : vector<16x16xf32>
    %35 = tpu.matmul %33, %34, %cst_15 {dimension_numbers = #tpu.dot_dimension_numbers<[1], [1], [0], [0], [0, 0, 1, 0], [], []>} : vector<16x8xf32>, vector<16x8xf32>, vector<16x16xf32> -> vector<16x16xf32>
    %36 = arith.addf %35, %1 : vector<16x16xf32>
    %cst_16 = arith.constant dense<0xFF800000> : vector<16xf32>
    %37 = vector.multi_reduction <maximumf>, %36, %cst_16 [1] : vector<16x16xf32> to vector<16xf32>
    %38 = vector.shape_cast %37 : vector<16xf32> to vector<16x1xf32>
    %39 = vector.broadcast %38 : vector<16x1xf32> to vector<16x16xf32>
    %40 = arith.subf %36, %39 : vector<16x16xf32>
    %41 = math.exp %40 : vector<16x16xf32>
    %cst_17 = arith.constant dense<0.000000e+00> : vector<16xf32>
    %42 = vector.multi_reduction <add>, %41, %cst_17 [1] : vector<16x16xf32> to vector<16xf32>
    %43 = vector.shape_cast %42 : vector<16xf32> to vector<16x1xf32>
    %44 = tpu.reciprocal %43 {approx = true} : vector<16x1xf32> -> vector<16x1xf32>
    %45 = vector.broadcast %44 : vector<16x1xf32> to vector<16x16xf32>
    %46 = arith.mulf %41, %45 : vector<16x16xf32>
    %47 = arith.maximumf %32, %46 : vector<16x16xf32>
    %48 = vector.extract_strided_slice %9 {offsets = [0, 0], sizes = [16, 8], strides = [1, 1]} : vector<16x32xf32> to vector<16x8xf32>
    %cst_18 = arith.constant dense<0.000000e+00> : vector<16x8xf32>
    %49 = tpu.matmul %47, %48, %cst_18 {dimension_numbers = #tpu.dot_dimension_numbers<[1], [0], [0], [1], [0, 0, 1, 1], [], []>} : vector<16x16xf32>, vector<16x8xf32>, vector<16x8xf32> -> vector<16x8xf32>
    %c64 = arith.constant 64 : index
    %c0_19 = arith.constant 0 : index
    %50 = vector.load %arg1[%c64, %c0_19] : memref<160x96xf32, #tpu.memory_space<vmem>>, vector<8x32xf32>
    %cst_20 = arith.constant dense<0.000000e+00> : vector<16x32xf32>
    %51 = tpu.matmul %49, %50, %cst_20 {dimension_numbers = #tpu.dot_dimension_numbers<[1], [0], [0], [1], [0, 0, 1, 1], [], []>} : vector<16x8xf32>, vector<8x32xf32>, vector<16x32xf32> -> vector<16x32xf32>
    %52 = arith.addf %18, %51 : vector<16x32xf32>
    %53 = vector.extract_strided_slice %7 {offsets = [0, 8], sizes = [16, 8], strides = [1, 1]} : vector<16x32xf32> to vector<16x8xf32>
    %54 = vector.extract_strided_slice %8 {offsets = [0, 8], sizes = [16, 8], strides = [1, 1]} : vector<16x32xf32> to vector<16x8xf32>
    %cst_21 = arith.constant dense<0.000000e+00> : vector<16x16xf32>
    %55 = tpu.matmul %53, %54, %cst_21 {dimension_numbers = #tpu.dot_dimension_numbers<[1], [1], [0], [0], [0, 0, 1, 0], [], []>} : vector<16x8xf32>, vector<16x8xf32>, vector<16x16xf32> -> vector<16x16xf32>
    %56 = arith.addf %55, %1 : vector<16x16xf32>
    %cst_22 = arith.constant dense<0xFF800000> : vector<16xf32>
    %57 = vector.multi_reduction <maximumf>, %56, %cst_22 [1] : vector<16x16xf32> to vector<16xf32>
    %58 = vector.shape_cast %57 : vector<16xf32> to vector<16x1xf32>
    %59 = vector.broadcast %58 : vector<16x1xf32> to vector<16x16xf32>
    %60 = arith.subf %56, %59 : vector<16x16xf32>
    %61 = math.exp %60 : vector<16x16xf32>
    %cst_23 = arith.constant dense<0.000000e+00> : vector<16xf32>
    %62 = vector.multi_reduction <add>, %61, %cst_23 [1] : vector<16x16xf32> to vector<16xf32>
    %63 = vector.shape_cast %62 : vector<16xf32> to vector<16x1xf32>
    %64 = tpu.reciprocal %63 {approx = true} : vector<16x1xf32> -> vector<16x1xf32>
    %65 = vector.broadcast %64 : vector<16x1xf32> to vector<16x16xf32>
    %66 = arith.mulf %61, %65 : vector<16x16xf32>
    %67 = vector.extract_strided_slice %16 {offsets = [0, 8], sizes = [16, 8], strides = [1, 1]} : vector<16x32xf32> to vector<16x8xf32>
    %68 = vector.extract_strided_slice %17 {offsets = [0, 8], sizes = [16, 8], strides = [1, 1]} : vector<16x32xf32> to vector<16x8xf32>
    %cst_24 = arith.constant dense<0.000000e+00> : vector<16x16xf32>
    %69 = tpu.matmul %67, %68, %cst_24 {dimension_numbers = #tpu.dot_dimension_numbers<[1], [1], [0], [0], [0, 0, 1, 0], [], []>} : vector<16x8xf32>, vector<16x8xf32>, vector<16x16xf32> -> vector<16x16xf32>
    %70 = arith.addf %69, %1 : vector<16x16xf32>
    %cst_25 = arith.constant dense<0xFF800000> : vector<16xf32>
    %71 = vector.multi_reduction <maximumf>, %70, %cst_25 [1] : vector<16x16xf32> to vector<16xf32>
    %72 = vector.shape_cast %71 : vector<16xf32> to vector<16x1xf32>
    %73 = vector.broadcast %72 : vector<16x1xf32> to vector<16x16xf32>
    %74 = arith.subf %70, %73 : vector<16x16xf32>
    %75 = math.exp %74 : vector<16x16xf32>
    %cst_26 = arith.constant dense<0.000000e+00> : vector<16xf32>
    %76 = vector.multi_reduction <add>, %75, %cst_26 [1] : vector<16x16xf32> to vector<16xf32>
    %77 = vector.shape_cast %76 : vector<16xf32> to vector<16x1xf32>
    %78 = tpu.reciprocal %77 {approx = true} : vector<16x1xf32> -> vector<16x1xf32>
    %79 = vector.broadcast %78 : vector<16x1xf32> to vector<16x16xf32>
    %80 = arith.mulf %75, %79 : vector<16x16xf32>
    %81 = arith.maximumf %66, %80 : vector<16x16xf32>
    %82 = vector.extract_strided_slice %9 {offsets = [0, 8], sizes = [16, 8], strides = [1, 1]} : vector<16x32xf32> to vector<16x8xf32>
    %cst_27 = arith.constant dense<0.000000e+00> : vector<16x8xf32>
    %83 = tpu.matmul %81, %82, %cst_27 {dimension_numbers = #tpu.dot_dimension_numbers<[1], [0], [0], [1], [0, 0, 1, 1], [], []>} : vector<16x16xf32>, vector<16x8xf32>, vector<16x8xf32> -> vector<16x8xf32>
    %c72 = arith.constant 72 : index
    %c0_28 = arith.constant 0 : index
    %84 = vector.load %arg1[%c72, %c0_28] : memref<160x96xf32, #tpu.memory_space<vmem>>, vector<8x32xf32>
    %cst_29 = arith.constant dense<0.000000e+00> : vector<16x32xf32>
    %85 = tpu.matmul %83, %84, %cst_29 {dimension_numbers = #tpu.dot_dimension_numbers<[1], [0], [0], [1], [0, 0, 1, 1], [], []>} : vector<16x8xf32>, vector<8x32xf32>, vector<16x32xf32> -> vector<16x32xf32>
    %86 = arith.addf %52, %85 : vector<16x32xf32>
    %87 = vector.extract_strided_slice %7 {offsets = [0, 16], sizes = [16, 8], strides = [1, 1]} : vector<16x32xf32> to vector<16x8xf32>
    %88 = vector.extract_strided_slice %8 {offsets = [0, 16], sizes = [16, 8], strides = [1, 1]} : vector<16x32xf32> to vector<16x8xf32>
    %cst_30 = arith.constant dense<0.000000e+00> : vector<16x16xf32>
    %89 = tpu.matmul %87, %88, %cst_30 {dimension_numbers = #tpu.dot_dimension_numbers<[1], [1], [0], [0], [0, 0, 1, 0], [], []>} : vector<16x8xf32>, vector<16x8xf32>, vector<16x16xf32> -> vector<16x16xf32>
    %90 = arith.addf %89, %1 : vector<16x16xf32>
    %cst_31 = arith.constant dense<0xFF800000> : vector<16xf32>
    %91 = vector.multi_reduction <maximumf>, %90, %cst_31 [1] : vector<16x16xf32> to vector<16xf32>
    %92 = vector.shape_cast %91 : vector<16xf32> to vector<16x1xf32>
    %93 = vector.broadcast %92 : vector<16x1xf32> to vector<16x16xf32>
    %94 = arith.subf %90, %93 : vector<16x16xf32>
    %95 = math.exp %94 : vector<16x16xf32>
    %cst_32 = arith.constant dense<0.000000e+00> : vector<16xf32>
    %96 = vector.multi_reduction <add>, %95, %cst_32 [1] : vector<16x16xf32> to vector<16xf32>
    %97 = vector.shape_cast %96 : vector<16xf32> to vector<16x1xf32>
    %98 = tpu.reciprocal %97 {approx = true} : vector<16x1xf32> -> vector<16x1xf32>
    %99 = vector.broadcast %98 : vector<16x1xf32> to vector<16x16xf32>
    %100 = arith.mulf %95, %99 : vector<16x16xf32>
    %101 = vector.extract_strided_slice %16 {offsets = [0, 16], sizes = [16, 8], strides = [1, 1]} : vector<16x32xf32> to vector<16x8xf32>
    %102 = vector.extract_strided_slice %17 {offsets = [0, 16], sizes = [16, 8], strides = [1, 1]} : vector<16x32xf32> to vector<16x8xf32>
    %cst_33 = arith.constant dense<0.000000e+00> : vector<16x16xf32>
    %103 = tpu.matmul %101, %102, %cst_33 {dimension_numbers = #tpu.dot_dimension_numbers<[1], [1], [0], [0], [0, 0, 1, 0], [], []>} : vector<16x8xf32>, vector<16x8xf32>, vector<16x16xf32> -> vector<16x16xf32>
    %104 = arith.addf %103, %1 : vector<16x16xf32>
    %cst_34 = arith.constant dense<0xFF800000> : vector<16xf32>
    %105 = vector.multi_reduction <maximumf>, %104, %cst_34 [1] : vector<16x16xf32> to vector<16xf32>
    %106 = vector.shape_cast %105 : vector<16xf32> to vector<16x1xf32>
    %107 = vector.broadcast %106 : vector<16x1xf32> to vector<16x16xf32>
    %108 = arith.subf %104, %107 : vector<16x16xf32>
    %109 = math.exp %108 : vector<16x16xf32>
    %cst_35 = arith.constant dense<0.000000e+00> : vector<16xf32>
    %110 = vector.multi_reduction <add>, %109, %cst_35 [1] : vector<16x16xf32> to vector<16xf32>
    %111 = vector.shape_cast %110 : vector<16xf32> to vector<16x1xf32>
    %112 = tpu.reciprocal %111 {approx = true} : vector<16x1xf32> -> vector<16x1xf32>
    %113 = vector.broadcast %112 : vector<16x1xf32> to vector<16x16xf32>
    %114 = arith.mulf %109, %113 : vector<16x16xf32>
    %115 = arith.maximumf %100, %114 : vector<16x16xf32>
    %116 = vector.extract_strided_slice %9 {offsets = [0, 16], sizes = [16, 8], strides = [1, 1]} : vector<16x32xf32> to vector<16x8xf32>
    %cst_36 = arith.constant dense<0.000000e+00> : vector<16x8xf32>
    %117 = tpu.matmul %115, %116, %cst_36 {dimension_numbers = #tpu.dot_dimension_numbers<[1], [0], [0], [1], [0, 0, 1, 1], [], []>} : vector<16x16xf32>, vector<16x8xf32>, vector<16x8xf32> -> vector<16x8xf32>
    %c80 = arith.constant 80 : index
    %c0_37 = arith.constant 0 : index
    %118 = vector.load %arg1[%c80, %c0_37] : memref<160x96xf32, #tpu.memory_space<vmem>>, vector<8x32xf32>
    %cst_38 = arith.constant dense<0.000000e+00> : vector<16x32xf32>
    %119 = tpu.matmul %117, %118, %cst_38 {dimension_numbers = #tpu.dot_dimension_numbers<[1], [0], [0], [1], [0, 0, 1, 1], [], []>} : vector<16x8xf32>, vector<8x32xf32>, vector<16x32xf32> -> vector<16x32xf32>
    %120 = arith.addf %86, %119 : vector<16x32xf32>
    %121 = vector.extract_strided_slice %7 {offsets = [0, 24], sizes = [16, 8], strides = [1, 1]} : vector<16x32xf32> to vector<16x8xf32>
    %122 = vector.extract_strided_slice %8 {offsets = [0, 24], sizes = [16, 8], strides = [1, 1]} : vector<16x32xf32> to vector<16x8xf32>
    %cst_39 = arith.constant dense<0.000000e+00> : vector<16x16xf32>
    %123 = tpu.matmul %121, %122, %cst_39 {dimension_numbers = #tpu.dot_dimension_numbers<[1], [1], [0], [0], [0, 0, 1, 0], [], []>} : vector<16x8xf32>, vector<16x8xf32>, vector<16x16xf32> -> vector<16x16xf32>
    %124 = arith.addf %123, %1 : vector<16x16xf32>
    %cst_40 = arith.constant dense<0xFF800000> : vector<16xf32>
    %125 = vector.multi_reduction <maximumf>, %124, %cst_40 [1] : vector<16x16xf32> to vector<16xf32>
    %126 = vector.shape_cast %125 : vector<16xf32> to vector<16x1xf32>
    %127 = vector.broadcast %126 : vector<16x1xf32> to vector<16x16xf32>
    %128 = arith.subf %124, %127 : vector<16x16xf32>
    %129 = math.exp %128 : vector<16x16xf32>
    %cst_41 = arith.constant dense<0.000000e+00> : vector<16xf32>
    %130 = vector.multi_reduction <add>, %129, %cst_41 [1] : vector<16x16xf32> to vector<16xf32>
    %131 = vector.shape_cast %130 : vector<16xf32> to vector<16x1xf32>
    %132 = tpu.reciprocal %131 {approx = true} : vector<16x1xf32> -> vector<16x1xf32>
    %133 = vector.broadcast %132 : vector<16x1xf32> to vector<16x16xf32>
    %134 = arith.mulf %129, %133 : vector<16x16xf32>
    %135 = vector.extract_strided_slice %16 {offsets = [0, 24], sizes = [16, 8], strides = [1, 1]} : vector<16x32xf32> to vector<16x8xf32>
    %136 = vector.extract_strided_slice %17 {offsets = [0, 24], sizes = [16, 8], strides = [1, 1]} : vector<16x32xf32> to vector<16x8xf32>
    %cst_42 = arith.constant dense<0.000000e+00> : vector<16x16xf32>
    %137 = tpu.matmul %135, %136, %cst_42 {dimension_numbers = #tpu.dot_dimension_numbers<[1], [1], [0], [0], [0, 0, 1, 0], [], []>} : vector<16x8xf32>, vector<16x8xf32>, vector<16x16xf32> -> vector<16x16xf32>
    %138 = arith.addf %137, %1 : vector<16x16xf32>
    %cst_43 = arith.constant dense<0xFF800000> : vector<16xf32>
    %139 = vector.multi_reduction <maximumf>, %138, %cst_43 [1] : vector<16x16xf32> to vector<16xf32>
    %140 = vector.shape_cast %139 : vector<16xf32> to vector<16x1xf32>
    %141 = vector.broadcast %140 : vector<16x1xf32> to vector<16x16xf32>
    %142 = arith.subf %138, %141 : vector<16x16xf32>
    %143 = math.exp %142 : vector<16x16xf32>
    %cst_44 = arith.constant dense<0.000000e+00> : vector<16xf32>
    %144 = vector.multi_reduction <add>, %143, %cst_44 [1] : vector<16x16xf32> to vector<16xf32>
    %145 = vector.shape_cast %144 : vector<16xf32> to vector<16x1xf32>
    %146 = tpu.reciprocal %145 {approx = true} : vector<16x1xf32> -> vector<16x1xf32>
    %147 = vector.broadcast %146 : vector<16x1xf32> to vector<16x16xf32>
    %148 = arith.mulf %143, %147 : vector<16x16xf32>
    %149 = arith.maximumf %134, %148 : vector<16x16xf32>
    %150 = vector.extract_strided_slice %9 {offsets = [0, 24], sizes = [16, 8], strides = [1, 1]} : vector<16x32xf32> to vector<16x8xf32>
    %cst_45 = arith.constant dense<0.000000e+00> : vector<16x8xf32>
    %151 = tpu.matmul %149, %150, %cst_45 {dimension_numbers = #tpu.dot_dimension_numbers<[1], [0], [0], [1], [0, 0, 1, 1], [], []>} : vector<16x16xf32>, vector<16x8xf32>, vector<16x8xf32> -> vector<16x8xf32>
    %c88 = arith.constant 88 : index
    %c0_46 = arith.constant 0 : index
    %152 = vector.load %arg1[%c88, %c0_46] : memref<160x96xf32, #tpu.memory_space<vmem>>, vector<8x32xf32>
    %cst_47 = arith.constant dense<0.000000e+00> : vector<16x32xf32>
    %153 = tpu.matmul %151, %152, %cst_47 {dimension_numbers = #tpu.dot_dimension_numbers<[1], [0], [0], [1], [0, 0, 1, 1], [], []>} : vector<16x8xf32>, vector<8x32xf32>, vector<16x32xf32> -> vector<16x32xf32>
    %154 = arith.addf %120, %153 : vector<16x32xf32>
    %c2 = arith.constant 2 : index
    %c0_48 = arith.constant 0 : index
    %155 = vector.load %arg2[%c2, %c0_48] : memref<32x96xf32, #tpu.memory_space<vmem>>, vector<1x32xf32>
    %c3 = arith.constant 3 : index
    %c0_49 = arith.constant 0 : index
    %156 = vector.load %arg2[%c3, %c0_49] : memref<32x96xf32, #tpu.memory_space<vmem>>, vector<1x32xf32>
    %c4 = arith.constant 4 : index
    %c0_50 = arith.constant 0 : index
    %157 = vector.load %arg2[%c4, %c0_50] : memref<32x96xf32, #tpu.memory_space<vmem>>, vector<1x32xf32>
    %c5 = arith.constant 5 : index
    %c0_51 = arith.constant 0 : index
    %158 = vector.load %arg2[%c5, %c0_51] : memref<32x96xf32, #tpu.memory_space<vmem>>, vector<1x32xf32>
    %c6 = arith.constant 6 : index
    %c0_52 = arith.constant 0 : index
    %159 = vector.load %arg2[%c6, %c0_52] : memref<32x96xf32, #tpu.memory_space<vmem>>, vector<1x32xf32>
    %c7 = arith.constant 7 : index
    %c0_53 = arith.constant 0 : index
    %160 = vector.load %arg2[%c7, %c0_53] : memref<32x96xf32, #tpu.memory_space<vmem>>, vector<1x32xf32>
    %c8 = arith.constant 8 : index
    %c0_54 = arith.constant 0 : index
    %161 = vector.load %arg2[%c8, %c0_54] : memref<32x96xf32, #tpu.memory_space<vmem>>, vector<1x32xf32>
    %162 = arith.addf %0, %154 : vector<16x32xf32>
    %163 = vector.broadcast %155 : vector<1x32xf32> to vector<16x32xf32>
    %164 = arith.addf %162, %163 : vector<16x32xf32>
    %cst_55 = arith.constant dense<0.000000e+00> : vector<16xf32>
    %165 = vector.multi_reduction <add>, %164, %cst_55 [1] : vector<16x32xf32> to vector<16xf32>
    %166 = vector.shape_cast %165 : vector<16xf32> to vector<16x1xf32>
    %cst_56 = arith.constant 3.200000e+01 : f32
    %167 = vector.broadcast %cst_56 : f32 to vector<16x1xf32>
    %168 = arith.divf %166, %167 : vector<16x1xf32>
    %169 = vector.broadcast %168 : vector<16x1xf32> to vector<16x32xf32>
    %170 = arith.subf %164, %169 : vector<16x32xf32>
    %171 = arith.mulf %170, %170 : vector<16x32xf32>
    %cst_57 = arith.constant dense<0.000000e+00> : vector<16xf32>
    %172 = vector.multi_reduction <add>, %171, %cst_57 [1] : vector<16x32xf32> to vector<16xf32>
    %173 = vector.shape_cast %172 : vector<16xf32> to vector<16x1xf32>
    %cst_58 = arith.constant 3.200000e+01 : f32
    %174 = vector.broadcast %cst_58 : f32 to vector<16x1xf32>
    %175 = arith.divf %173, %174 : vector<16x1xf32>
    %176 = vector.broadcast %168 : vector<16x1xf32> to vector<16x32xf32>
    %177 = arith.subf %164, %176 : vector<16x32xf32>
    %cst_59 = arith.constant 9.99999974E-6 : f32
    %178 = vector.broadcast %cst_59 : f32 to vector<16x1xf32>
    %179 = arith.addf %175, %178 : vector<16x1xf32>
    %180 = math.rsqrt %179 : vector<16x1xf32>
    %181 = vector.broadcast %180 : vector<16x1xf32> to vector<16x32xf32>
    %182 = arith.mulf %177, %181 : vector<16x32xf32>
    %183 = vector.broadcast %158 : vector<1x32xf32> to vector<16x32xf32>
    %184 = arith.mulf %182, %183 : vector<16x32xf32>
    %185 = vector.broadcast %159 : vector<1x32xf32> to vector<16x32xf32>
    %186 = arith.addf %184, %185 : vector<16x32xf32>
    %c96 = arith.constant 96 : index
    %c0_60 = arith.constant 0 : index
    %187 = vector.load %arg1[%c96, %c0_60] : memref<160x96xf32, #tpu.memory_space<vmem>>, vector<32x32xf32>
    %cst_61 = arith.constant dense<0.000000e+00> : vector<16x32xf32>
    %188 = tpu.matmul %186, %187, %cst_61 {dimension_numbers = #tpu.dot_dimension_numbers<[1], [0], [0], [1], [0, 0, 1, 1], [], []>} : vector<16x32xf32>, vector<32x32xf32>, vector<16x32xf32> -> vector<16x32xf32>
    %189 = vector.broadcast %156 : vector<1x32xf32> to vector<16x32xf32>
    %190 = arith.addf %188, %189 : vector<16x32xf32>
    %cst_62 = arith.constant 5.000000e-01 : f32
    %191 = vector.broadcast %cst_62 : f32 to vector<16x32xf32>
    %192 = arith.mulf %190, %191 : vector<16x32xf32>
    %cst_63 = arith.constant 1.41421354 : f32
    %193 = vector.broadcast %cst_63 : f32 to vector<16x32xf32>
    %194 = arith.divf %190, %193 : vector<16x32xf32>
    %195 = math.erf %194 : vector<16x32xf32>
    %cst_64 = arith.constant 1.000000e+00 : f32
    %196 = vector.broadcast %cst_64 : f32 to vector<16x32xf32>
    %197 = arith.addf %196, %195 : vector<16x32xf32>
    %198 = arith.mulf %192, %197 : vector<16x32xf32>
    %c128 = arith.constant 128 : index
    %c0_65 = arith.constant 0 : index
    %199 = vector.load %arg1[%c128, %c0_65] : memref<160x96xf32, #tpu.memory_space<vmem>>, vector<32x32xf32>
    %cst_66 = arith.constant dense<0.000000e+00> : vector<16x32xf32>
    %200 = tpu.matmul %198, %199, %cst_66 {dimension_numbers = #tpu.dot_dimension_numbers<[1], [0], [0], [1], [0, 0, 1, 1], [], []>} : vector<16x32xf32>, vector<32x32xf32>, vector<16x32xf32> -> vector<16x32xf32>
    %201 = vector.broadcast %157 : vector<1x32xf32> to vector<16x32xf32>
    %202 = arith.addf %200, %201 : vector<16x32xf32>
    %203 = arith.addf %186, %202 : vector<16x32xf32>
    %cst_67 = arith.constant dense<0.000000e+00> : vector<16xf32>
    %204 = vector.multi_reduction <add>, %203, %cst_67 [1] : vector<16x32xf32> to vector<16xf32>
    %205 = vector.shape_cast %204 : vector<16xf32> to vector<16x1xf32>
    %cst_68 = arith.constant 3.200000e+01 : f32
    %206 = vector.broadcast %cst_68 : f32 to vector<16x1xf32>
    %207 = arith.divf %205, %206 : vector<16x1xf32>
    %208 = vector.broadcast %207 : vector<16x1xf32> to vector<16x32xf32>
    %209 = arith.subf %203, %208 : vector<16x32xf32>
    %210 = arith.mulf %209, %209 : vector<16x32xf32>
    %cst_69 = arith.constant dense<0.000000e+00> : vector<16xf32>
    %211 = vector.multi_reduction <add>, %210, %cst_69 [1] : vector<16x32xf32> to vector<16xf32>
    %212 = vector.shape_cast %211 : vector<16xf32> to vector<16x1xf32>
    %cst_70 = arith.constant 3.200000e+01 : f32
    %213 = vector.broadcast %cst_70 : f32 to vector<16x1xf32>
    %214 = arith.divf %212, %213 : vector<16x1xf32>
    %215 = vector.broadcast %207 : vector<16x1xf32> to vector<16x32xf32>
    %216 = arith.subf %203, %215 : vector<16x32xf32>
    %cst_71 = arith.constant 9.99999974E-6 : f32
    %217 = vector.broadcast %cst_71 : f32 to vector<16x1xf32>
    %218 = arith.addf %214, %217 : vector<16x1xf32>
    %219 = math.rsqrt %218 : vector<16x1xf32>
    %220 = vector.broadcast %219 : vector<16x1xf32> to vector<16x32xf32>
    %221 = arith.mulf %216, %220 : vector<16x32xf32>
    %222 = vector.broadcast %160 : vector<1x32xf32> to vector<16x32xf32>
    %223 = arith.mulf %221, %222 : vector<16x32xf32>
    %224 = vector.broadcast %161 : vector<1x32xf32> to vector<16x32xf32>
    %225 = arith.addf %223, %224 : vector<16x32xf32>
    %c0_72 = arith.constant 0 : index
    %c0_73 = arith.constant 0 : index
    %226 = vector.load %arg3[%c0_72, %c0_73] : memref<16x32xf32, #tpu.memory_space<vmem>>, vector<16x32xf32>
    tpu.vector_store %arg3[%c0_72, %c0_73], %225 {strides = array<i32>} : memref<16x32xf32, #tpu.memory_space<vmem>>, vector<16x32xf32>,
    return
  }
}

</mosaic_0001>

<llo_original>
// kernel: tpu_custom_call.1
$region0: #{tpu_custom_call.1}
  #allocation0 [shape = 'u32[]', space=smem, size = 0x4, offset = 0x4, fixed_abs, tag = 'smem constant byte address 0x4 - core index']
  #allocation1 [shape = 'u32[144,128]{1,0:T(1,128)}', space=vmem, size = 0x12000, scoped, tag = 'internal scratch']
  %s0 = inlined_call_operand.hbm [shape: f32[32,32], index: 0, kind: input, shape index: {}]
  %s1 = inlined_call_operand.hbm [shape: f32[160,96], index: 1, kind: input, shape index: {}]
  %s2 = inlined_call_operand.hbm [shape: f32[32,96], index: 2, kind: input, shape index: {}]
  %s3 = inlined_call_operand.hbm [shape: f32[16,32], index: 3, kind: output, shape index: {}]
  %s4 = sld [smem:[#allocation0]]
  $region34: #{tpu_custom_call.1} parent=0
    _
  %s6 = ssub.s32 1, %s4
  %s7 = scalar_select 0, %s6, %s4
  $region1: #{tpu_custom_call.1} parent=0
    #allocation2 [shape = 'u8[16384]{0}', space=vmem, size = 0x4000, scoped, tag = 'input window, operand 0, single buffered']
    #allocation3 [shape = 's32[1]{0}', space=sflag, size = 0x4, scoped, tag = 'scoped memory for tpu_custom_call.1']
    #allocation4 [shape = 's32[1]{0}', space=sflag, size = 0x4, scoped, tag = 'scoped memory for tpu_custom_call.1']
    #allocation5 [shape = 'u8[81920]{0}', space=vmem, size = 0x14000, scoped, tag = 'input window, operand 1, single buffered']
    #allocation6 [shape = 's32[1]{0}', space=sflag, size = 0x4, scoped, tag = 'scoped memory for tpu_custom_call.1']
    #allocation7 [shape = 'u8[16384]{0}', space=vmem, size = 0x4000, scoped, tag = 'input window, operand 2, single buffered']
    #allocation8 [shape = 'u8[8192]{0}', space=vmem, size = 0x2000, scoped, tag = 'output window, operand 0, single buffered']
    %8 = vsyncpa [#allocation3], 0
    %9 = vsyncpa [#allocation6], 0
    %10 = vsyncpa [#allocation4], 0
    // Predicated region
    $region2: #{tpu_custom_call.1} parent=1 // pred_check
      _
    $region3: #{tpu_custom_call.1} parent=1 // pred_check_branch
      %12 = sbr.rel (0) target = $region5
    $region4: #{tpu_custom_call.1} parent=1 // pred_region
      %s14 = ssub.s32 512, 512
      %15 = vsyncadd [#allocation3], %s14
      %s16 = sshll.u32 [#allocation2], 4
      %s17 = int_to_ptr.vmem [resolvable:$true] %s16
      %22 = dma.hbm_to_vmem [thread:$0]  %s0, 512, %s17, [#allocation3], 128, 128, 8
    $region5: #{tpu_custom_call.1} parent=1 // pred_fallthru
      _
    // Predicated region
    $region6: #{tpu_custom_call.1} parent=1 // pred_check
      _
    $region7: #{tpu_custom_call.1} parent=1 // pred_check_branch
      %24 = sbr.rel (0) target = $region9
    $region8: #{tpu_custom_call.1} parent=1 // pred_region
      %s26 = ssub.s32 2560, 2560
      %27 = vsyncadd [#allocation6], %s26
      %s28 = sshll.u32 [#allocation5], 4
      %s29 = int_to_ptr.vmem [resolvable:$true] %s28
      %34 = dma.hbm_to_vmem [thread:$0]  %s1, 2560, %s29, [#allocation6], 128, 128, 8
    $region9: #{tpu_custom_call.1} parent=1 // pred_fallthru
      _
    // Predicated region
    $region10: #{tpu_custom_call.1} parent=1 // pred_check
      _
    $region11: #{tpu_custom_call.1} parent=1 // pred_check_branch
      %36 = sbr.rel (0) target = $region13
    $region12: #{tpu_custom_call.1} parent=1 // pred_region
      %s38 = ssub.s32 512, 512
      %39 = vsyncadd [#allocation6], %s38
      %s40 = sshll.u32 [#allocation7], 4
      %s41 = int_to_ptr.vmem [resolvable:$true] %s40
      %46 = dma.hbm_to_vmem [thread:$0]  %s2, 512, %s41, [#allocation6], 128, 128, 8
    $region13: #{tpu_custom_call.1} parent=1 // pred_fallthru
      _
    // Predicated region
    $region14: #{tpu_custom_call.1} parent=1 // pred_check
      _
    $region15: #{tpu_custom_call.1} parent=1 // pred_check_branch
      %48 = sbr.rel (0) target = $region17
    $region16: #{tpu_custom_call.1} parent=1 // pred_region
      %49 = dma.done [#allocation3], 512
    $region17: #{tpu_custom_call.1} parent=1 // pred_fallthru
      _
    // Predicated region
    $region18: #{tpu_custom_call.1} parent=1 // pred_check
      _
    $region19: #{tpu_custom_call.1} parent=1 // pred_check_branch
      %51 = sbr.rel (0) target = $region21
    $region20: #{tpu_custom_call.1} parent=1 // pred_region
      %52 = dma.done [#allocation6], 2560
    $region21: #{tpu_custom_call.1} parent=1 // pred_fallthru
      _
    // Predicated region
    $region22: #{tpu_custom_call.1} parent=1 // pred_check
      _
    $region23: #{tpu_custom_call.1} parent=1 // pred_check_branch
      %54 = sbr.rel (0) target = $region25
    $region24: #{tpu_custom_call.1} parent=1 // pred_region
      %55 = dma.done [#allocation6], 512
    $region25: #{tpu_custom_call.1} parent=1 // pred_fallthru
      _
    %v56 = vld [vmem:[#allocation2] sm:$0xff]
    %v57 = vld [vmem:[#allocation2 + $0x8] sm:$0xff]
    %v58 = vld [vmem:[#allocation7 + $0x10] sm:$0xff]
    %v59 = vld [vmem:[#allocation7 + $0x18] sm:$0xff]
    %v60 = vld [vmem:[#allocation5] sm:$0xff]
    %v61 = vld [vmem:[#allocation5 + $0x8] sm:$0xff]
    %v62 = vld [vmem:[#allocation5 + $0x10] sm:$0xff]
    %v63 = vld [vmem:[#allocation5 + $0x18] sm:$0xff]
    %v64 = vld [vmem:[#allocation7] sm:$0x1]
    %v65 = vlaneseq
    %v66 = vshrl.u32 %v65, 7
    %v67 = vsub.s32 0, %v66
    %v68 = vrot.slane %v64, %v67
    %vm69 = vcmask 261120
    %v71 = vsel %vm69, %v56, 0
    %v74 = vsel %vm69, %v57, 0
    %76 = vmatprep.subr.mxu0 0.0
    %77 = vmatpush1.msra.mxu0 %v60
    %78 = vmatprep.subr.mxu0 0.0
    %79 = vmatpush1.msra.mxu0 %v61
    %80 = vmatprep.subr.mxu0 0.0
    %81 = vmatpush1.msra.mxu0 %v62
    %82 = vmatprep.subr.mxu0 0.0
    %83 = vmatpush1.msra.mxu0 %v63
    %84 = vmatprep.subr.mxu0 0.0
    %85 = vmatpush1.msra.mxu0 0.0
    %86 = vmatprep.subr.mxu0 0.0
    %87 = vmatpush1.msra.mxu0 0.0
    %88 = vmatprep.subr.mxu0 0.0
    %89 = vmatpush1.msra.mxu0 0.0
    %90 = vmatprep.subr.mxu0 0.0
    %91 = vmatpush1.msra.mxu0 0.0
    %92 = vmatprep.subr.mxu0 0.0
    %93 = vmatpush1.msra.mxu0 0.0
    %94 = vmatprep.subr.mxu0 0.0
    %95 = vmatpush1.msra.mxu0 0.0
    %96 = vmatprep.subr.mxu0 0.0
    %97 = vmatpush1.msra.mxu0 0.0
    %98 = vmatprep.subr.mxu0 0.0
    %99 = vmatpush1.msra.mxu0 0.0
    %100 = vmatprep.subr.mxu0 0.0
    %101 = vmatpush1.msra.mxu0 0.0
    %102 = vmatprep.subr.mxu0 0.0
    %103 = vmatpush1.msra.mxu0 0.0
    %104 = vmatprep.subr.mxu0 0.0
    %105 = vmatpush1.msra.mxu0 0.0
    %106 = vmatprep.subr.mxu0 0.0
    %107 = vmatpush1.msra.mxu0 0.0
    %108 = vmatprep.subr.mxu0 0.0
    %109 = vmatpush1.msra.mxu0 0.0
    %110 = vmatprep.subr.mxu0 0.0
    %111 = vmatpush1.msra.mxu0 0.0
    %112 = vmatprep.subr.mxu0 0.0
    %113 = vmatpush1.msra.mxu0 0.0
    %114 = vmatprep.subr.mxu0 0.0
    %115 = vmatpush1.msra.mxu0 0.0
    %116 = vmatprep.subr.mxu0 0.0
    %117 = vmatpush1.msra.mxu0 0.0
    %118 = vmatprep.subr.mxu0 0.0
    %119 = vmatpush1.msra.mxu0 0.0
    %120 = vmatprep.subr.mxu0 0.0
    %121 = vmatpush1.msra.mxu0 0.0
    %122 = vmatprep.subr.mxu0 0.0
    %123 = vmatpush1.msra.mxu0 0.0
    %124 = vmatprep.subr.mxu0 0.0
    %125 = vmatpush1.msra.mxu0 0.0
    %126 = vmatprep.subr.mxu0 0.0
    %127 = vmatpush1.msra.mxu0 0.0
    %128 = vmatprep.subr.mxu0 0.0
    %129 = vmatpush1.msra.mxu0 0.0
    %130 = vmatprep.subr.mxu0 0.0
    %131 = vmatpush1.msra.mxu0 0.0
    %132 = vmatprep.subr.mxu0 0.0
    %133 = vmatpush1.msra.mxu0 0.0
    %134 = vmatprep.subr.mxu0 0.0
    %135 = vmatpush1.msra.mxu0 0.0
    %136 = vmatprep.subr.mxu0 0.0
    %137 = vmatpush1.msra.mxu0 0.0
    %138 = vmatprep.subr.mxu0 0.0
    %139 = vmatpush1.msra.mxu0 0.0
    %140 = vmatprep.mubr.f32.mxu0 0.0
    %141 = vmatmul.mubr.f32.gmra.mrb[0].mxu0 %v71
    %v142 = vpop.f32.mrb[0].mxu0
    %v143 = vadd.f32 %v68, %v142
    %v144 = vpop.f32.mrb[0].mxu0
    %145 = vmatprep.mubr.f32.mxu0 0.0
    %146 = vmatmul.mubr.f32.gmra.mrb[0].mxu0 %v74
    %v147 = vpop.f32.mrb[0].mxu0
    %v148 = vadd.f32 %v68, %v147
    %v149 = vpop.f32.mrb[0].mxu0
    %150 = vdwg.mxu0
    %v151 = vld [vmem:[#allocation2 + $0x10] sm:$0xff]
    %v152 = vld [vmem:[#allocation2 + $0x18] sm:$0xff]
    %v153 = vld [vmem:[#allocation5 + $0x20] sm:$0xff]
    %v154 = vld [vmem:[#allocation5 + $0x28] sm:$0xff]
    %v155 = vld [vmem:[#allocation5 + $0x30] sm:$0xff]
    %v156 = vld [vmem:[#allocation5 + $0x38] sm:$0xff]
    %v157 = vld [vmem:[#allocation7 + $0x1] sm:$0x1]
    %v158 = vlaneseq
    %v159 = vshrl.u32 %v158, 7
    %v160 = vsub.s32 0, %v159
    %v161 = vrot.slane %v157, %v160
    %v163 = vsel %vm69, %v151, 0
    %v166 = vsel %vm69, %v152, 0
    %168 = vmatprep.subr.mxu0 0.0
    %169 = vmatpush1.msra.mxu0 %v153
    %170 = vmatprep.subr.mxu0 0.0
    %171 = vmatpush1.msra.mxu0 %v154
    %172 = vmatprep.subr.mxu0 0.0
    %173 = vmatpush1.msra.mxu0 %v155
    %174 = vmatprep.subr.mxu0 0.0
    %175 = vmatpush1.msra.mxu0 %v156
    %176 = vmatprep.subr.mxu0 0.0
    %177 = vmatpush1.msra.mxu0 0.0
    %178 = vmatprep.subr.mxu0 0.0
    %179 = vmatpush1.msra.mxu0 0.0
    %180 = vmatprep.subr.mxu0 0.0
    %181 = vmatpush1.msra.mxu0 0.0
    %182 = vmatprep.subr.mxu0 0.0
    %183 = vmatpush1.msra.mxu0 0.0
    %184 = vmatprep.subr.mxu0 0.0
    %185 = vmatpush1.msra.mxu0 0.0
    %186 = vmatprep.subr.mxu0 0.0
    %187 = vmatpush1.msra.mxu0 0.0
    %188 = vmatprep.subr.mxu0 0.0
    %189 = vmatpush1.msra.mxu0 0.0
    %190 = vmatprep.subr.mxu0 0.0
    %191 = vmatpush1.msra.mxu0 0.0
    %192 = vmatprep.subr.mxu0 0.0
    %193 = vmatpush1.msra.mxu0 0.0
    %194 = vmatprep.subr.mxu0 0.0
    %195 = vmatpush1.msra.mxu0 0.0
    %196 = vmatprep.subr.mxu0 0.0
    %197 = vmatpush1.msra.mxu0 0.0
    %198 = vmatprep.subr.mxu0 0.0
    %199 = vmatpush1.msra.mxu0 0.0
    %200 = vmatprep.subr.mxu0 0.0
    %201 = vmatpush1.msra.mxu0 0.0
    %202 = vmatprep.subr.mxu0 0.0
    %203 = vmatpush1.msra.mxu0 0.0
    %204 = vmatprep.subr.mxu0 0.0
    %205 = vmatpush1.msra.mxu0 0.0
    %206 = vmatprep.subr.mxu0 0.0
    %207 = vmatpush1.msra.mxu0 0.0
    %208 = vmatprep.subr.mxu0 0.0
    %209 = vmatpush1.msra.mxu0 0.0
    %210 = vmatprep.subr.mxu0 0.0
    %211 = vmatpush1.msra.mxu0 0.0
    %212 = vmatprep.subr.mxu0 0.0
    %213 = vmatpush1.msra.mxu0 0.0
    %214 = vmatprep.subr.mxu0 0.0
    %215 = vmatpush1.msra.mxu0 0.0
    %216 = vmatprep.subr.mxu0 0.0
    %217 = vmatpush1.msra.mxu0 0.0
    %218 = vmatprep.subr.mxu0 0.0
    %219 = vmatpush1.msra.mxu0 0.0
    %220 = vmatprep.subr.mxu0 0.0
    %221 = vmatpush1.msra.mxu0 0.0
    %222 = vmatprep.subr.mxu0 0.0
    %223 = vmatpush1.msra.mxu0 0.0
    %224 = vmatprep.subr.mxu0 0.0
    %225 = vmatpush1.msra.mxu0 0.0
    %226 = vmatprep.subr.mxu0 0.0
    %227 = vmatpush1.msra.mxu0 0.0
    %228 = vmatprep.subr.mxu0 0.0
    %229 = vmatpush1.msra.mxu0 0.0
    %230 = vmatprep.subr.mxu0 0.0
    %231 = vmatpush1.msra.mxu0 0.0
    %232 = vmatprep.mubr.f32.mxu0 0.0
    %233 = vmatmul.mubr.f32.gmra.mrb[0].mxu0 %v163
    %v234 = vpop.f32.mrb[0].mxu0
    %v235 = vadd.f32 %v161, %v234
    %v236 = vpop.f32.mrb[0].mxu0
    %237 = vmatprep.mubr.f32.mxu0 0.0
    %238 = vmatmul.mubr.f32.gmra.mrb[0].mxu0 %v166
    %v239 = vpop.f32.mrb[0].mxu0
    %v240 = vadd.f32 %v161, %v239
    %v241 = vpop.f32.mrb[0].mxu0
    %242 = vdwg.mxu0
    %245 = vrot.lane.b32.xlu0 %v143, 96
    %v246 = vpop.permute.xlu0 %245
    %247 = vrot.lane.b32.xlu0 %v148, 96
    %v248 = vpop.permute.xlu0 %247
    %vm249 = vcmask 64512
    %v250 = vsel %vm249, %v143, 0
    %v252 = vsel %vm249, %v148, 0
    %v254 = vsel %vm249, %v246, 0
    %v256 = vsel %vm249, %v248, 0
    %258 = vmatprep.subr.mxu0 0.0
    %259 = vmatpush1.xpose.msra.mxu0 %v254
    %260 = vmatprep.subr.mxu0 0.0
    %261 = vmatpush1.xpose.msra.mxu0 %v256
    %262 = vmatprep.subr.mxu0 0.0
    %263 = vmatpush1.xpose.msra.mxu0 0.0
    %264 = vmatprep.subr.mxu0 0.0
    %265 = vmatpush1.xpose.msra.mxu0 0.0
    %266 = vmatprep.subr.mxu0 0.0
    %267 = vmatpush1.xpose.msra.mxu0 0.0
    %268 = vmatprep.subr.mxu0 0.0
    %269 = vmatpush1.xpose.msra.mxu0 0.0
    %270 = vmatprep.subr.mxu0 0.0
    %271 = vmatpush1.xpose.msra.mxu0 0.0
    %272 = vmatprep.subr.mxu0 0.0
    %273 = vmatpush1.xpose.msra.mxu0 0.0
    %274 = vmatprep.subr.mxu0 0.0
    %275 = vmatpush1.xpose.msra.mxu0 0.0
    %276 = vmatprep.subr.mxu0 0.0
    %277 = vmatpush1.xpose.msra.mxu0 0.0
    %278 = vmatprep.subr.mxu0 0.0
    %279 = vmatpush1.xpose.msra.mxu0 0.0
    %280 = vmatprep.subr.mxu0 0.0
    %281 = vmatpush1.xpose.msra.mxu0 0.0
    %282 = vmatprep.subr.mxu0 0.0
    %283 = vmatpush1.xpose.msra.mxu0 0.0
    %284 = vmatprep.subr.mxu0 0.0
    %285 = vmatpush1.xpose.msra.mxu0 0.0
    %286 = vmatprep.subr.mxu0 0.0
    %287 = vmatpush1.xpose.msra.mxu0 0.0
    %288 = vmatprep.subr.mxu0 0.0
    %289 = vmatpush1.xpose.msra.mxu0 0.0
    %290 = vmatprep.subr.mxu0 0.0
    %291 = vmatpush1.xpose.msra.mxu0 0.0
    %292 = vmatprep.subr.mxu0 0.0
    %293 = vmatpush1.xpose.msra.mxu0 0.0
    %294 = vmatprep.subr.mxu0 0.0
    %295 = vmatpush1.xpose.msra.mxu0 0.0
    %296 = vmatprep.subr.mxu0 0.0
    %297 = vmatpush1.xpose.msra.mxu0 0.0
    %298 = vmatprep.subr.mxu0 0.0
    %299 = vmatpush1.xpose.msra.mxu0 0.0
    %300 = vmatprep.subr.mxu0 0.0
    %301 = vmatpush1.xpose.msra.mxu0 0.0
    %302 = vmatprep.subr.mxu0 0.0
    %303 = vmatpush1.xpose.msra.mxu0 0.0
    %304 = vmatprep.subr.mxu0 0.0
    %305 = vmatpush1.xpose.msra.mxu0 0.0
    %306 = vmatprep.subr.mxu0 0.0
    %307 = vmatpush1.xpose.msra.mxu0 0.0
    %308 = vmatprep.subr.mxu0 0.0
    %309 = vmatpush1.xpose.msra.mxu0 0.0
    %310 = vmatprep.subr.mxu0 0.0
    %311 = vmatpush1.xpose.msra.mxu0 0.0
    %312 = vmatprep.subr.mxu0 0.0
    %313 = vmatpush1.xpose.msra.mxu0 0.0
    %314 = vmatprep.subr.mxu0 0.0
    %315 = vmatpush1.xpose.msra.mxu0 0.0
    %316 = vmatprep.subr.mxu0 0.0
    %317 = vmatpush1.xpose.msra.mxu0 0.0
    %318 = vmatprep.subr.mxu0 0.0
    %319 = vmatpush1.xpose.msra.mxu0 0.0
    %320 = vmatprep.subr.mxu0 0.0
    %321 = vmatpush1.xpose.msra.mxu0 0.0
    %322 = vmatprep.mubr.f32.mxu0 0.0
    %323 = vmatmul.mubr.f32.gmra.mrb[0].mxu0 %v250
    %v324 = vpop.f32.mrb[0].mxu0
    %v325 = vadd.f32 %v58, %v324
    %v326 = vpop.f32.mrb[0].mxu0
    %327 = vmatprep.mubr.f32.mxu0 0.0
    %328 = vmatmul.mubr.f32.gmra.mrb[0].mxu0 %v252
    %v329 = vpop.f32.mrb[0].mxu0
    %v330 = vadd.f32 %v59, %v329
    %v331 = vpop.f32.mrb[0].mxu0
    %332 = vdwg.mxu0
    %vm333 = vcmask 130048
    %v334 = vsel %vm333, %v325, -inf
    %335 = vmax.xlane.f32.xlu0 %v334
    %v336 = vpop.xlane.xlu0 %335
    %v337 = vsel %vm333, %v330, -inf
    %338 = vmax.xlane.f32.xlu0 %v337
    %v339 = vpop.xlane.xlu0 %338
    %v340 = vsub.f32 %v325, %v336
    %v341 = vsub.f32 %v330, %v339
    %v342 = vmul.f32 %v340, 1.442695
    %v343 = vpow.pop %v342
    %v344 = vmul.f32 %v341, 1.442695
    %v345 = vpow.pop %v344
    %v346 = vsel %vm333, %v343, 0.0
    %347 = vadd.xlane.f32.xlu0 %v346
    %v348 = vpop.xlane.xlu0 %347
    %v349 = vsel %vm333, %v345, 0.0
    %350 = vadd.xlane.f32.xlu0 %v349
    %v351 = vpop.xlane.xlu0 %350
    %v352 = vrcp.pop %v348
    %v353 = vrcp.pop %v351
    %v354 = vmul.f32 %v343, %v352
    %v355 = vmul.f32 %v345, %v353
    %358 = vrot.lane.b32.xlu0 %v235, 96
    %v359 = vpop.permute.xlu0 %358
    %360 = vrot.lane.b32.xlu0 %v240, 96
    %v361 = vpop.permute.xlu0 %360
    %v362 = vsel %vm249, %v235, 0
    %v364 = vsel %vm249, %v240, 0
    %v366 = vsel %vm249, %v359, 0
    %v368 = vsel %vm249, %v361, 0
    %370 = vmatprep.subr.mxu0 0.0
    %371 = vmatpush1.xpose.msra.mxu0 %v366
    %372 = vmatprep.subr.mxu0 0.0
    %373 = vmatpush1.xpose.msra.mxu0 %v368
    %374 = vmatprep.subr.mxu0 0.0
    %375 = vmatpush1.xpose.msra.mxu0 0.0
    %376 = vmatprep.subr.mxu0 0.0
    %377 = vmatpush1.xpose.msra.mxu0 0.0
    %378 = vmatprep.subr.mxu0 0.0
    %379 = vmatpush1.xpose.msra.mxu0 0.0
    %380 = vmatprep.subr.mxu0 0.0
    %381 = vmatpush1.xpose.msra.mxu0 0.0
    %382 = vmatprep.subr.mxu0 0.0
    %383 = vmatpush1.xpose.msra.mxu0 0.0
    %384 = vmatprep.subr.mxu0 0.0
    %385 = vmatpush1.xpose.msra.mxu0 0.0
    %386 = vmatprep.subr.mxu0 0.0
    %387 = vmatpush1.xpose.msra.mxu0 0.0
    %388 = vmatprep.subr.mxu0 0.0
    %389 = vmatpush1.xpose.msra.mxu0 0.0
    %390 = vmatprep.subr.mxu0 0.0
    %391 = vmatpush1.xpose.msra.mxu0 0.0
    %392 = vmatprep.subr.mxu0 0.0
    %393 = vmatpush1.xpose.msra.mxu0 0.0
    %394 = vmatprep.subr.mxu0 0.0
    %395 = vmatpush1.xpose.msra.mxu0 0.0
    %396 = vmatprep.subr.mxu0 0.0
    %397 = vmatpush1.xpose.msra.mxu0 0.0
    %398 = vmatprep.subr.mxu0 0.0
    %399 = vmatpush1.xpose.msra.mxu0 0.0
    %400 = vmatprep.subr.mxu0 0.0
    %401 = vmatpush1.xpose.msra.mxu0 0.0
    %402 = vmatprep.subr.mxu0 0.0
    %403 = vmatpush1.xpose.msra.mxu0 0.0
    %404 = vmatprep.subr.mxu0 0.0
    %405 = vmatpush1.xpose.msra.mxu0 0.0
    %406 = vmatprep.subr.mxu0 0.0
    %407 = vmatpush1.xpose.msra.mxu0 0.0
    %408 = vmatprep.subr.mxu0 0.0
    %409 = vmatpush1.xpose.msra.mxu0 0.0
    %410 = vmatprep.subr.mxu0 0.0
    %411 = vmatpush1.xpose.msra.mxu0 0.0
    %412 = vmatprep.subr.mxu0 0.0
    %413 = vmatpush1.xpose.msra.mxu0 0.0
    %414 = vmatprep.subr.mxu0 0.0
    %415 = vmatpush1.xpose.msra.mxu0 0.0
    %416 = vmatprep.subr.mxu0 0.0
    %417 = vmatpush1.xpose.msra.mxu0 0.0
    %418 = vmatprep.subr.mxu0 0.0
    %419 = vmatpush1.xpose.msra.mxu0 0.0
    %420 = vmatprep.subr.mxu0 0.0
    %421 = vmatpush1.xpose.msra.mxu0 0.0
    %422 = vmatprep.subr.mxu0 0.0
    %423 = vmatpush1.xpose.msra.mxu0 0.0
    %424 = vmatprep.subr.mxu0 0.0
    %425 = vmatpush1.xpose.msra.mxu0 0.0
    %426 = vmatprep.subr.mxu0 0.0
    %427 = vmatpush1.xpose.msra.mxu0 0.0
    %428 = vmatprep.subr.mxu0 0.0
    %429 = vmatpush1.xpose.msra.mxu0 0.0
    %430 = vmatprep.subr.mxu0 0.0
    %431 = vmatpush1.xpose.msra.mxu0 0.0
    %432 = vmatprep.subr.mxu0 0.0
    %433 = vmatpush1.xpose.msra.mxu0 0.0
    %434 = vmatprep.mubr.f32.mxu0 0.0
    %435 = vmatmul.mubr.f32.gmra.mrb[0].mxu0 %v362
    %v436 = vpop.f32.mrb[0].mxu0
    %v437 = vadd.f32 %v58, %v436
    %v438 = vpop.f32.mrb[0].mxu0
    %439 = vmatprep.mubr.f32.mxu0 0.0
    %440 = vmatmul.mubr.f32.gmra.mrb[0].mxu0 %v364
    %v441 = vpop.f32.mrb[0].mxu0
    %v442 = vadd.f32 %v59, %v441
    %v443 = vpop.f32.mrb[0].mxu0
    %444 = vdwg.mxu0
    %v445 = vsel %vm333, %v437, -inf
    %446 = vmax.xlane.f32.xlu0 %v445
    %v447 = vpop.xlane.xlu0 %446
    %v448 = vsel %vm333, %v442, -inf
    %449 = vmax.xlane.f32.xlu0 %v448
    %v450 = vpop.xlane.xlu0 %449
    %v451 = vsub.f32 %v437, %v447
    %v452 = vsub.f32 %v442, %v450
    %v453 = vmul.f32 %v451, 1.442695
    %v454 = vpow.pop %v453
    %v455 = vmul.f32 %v452, 1.442695
    %v456 = vpow.pop %v455
    %v457 = vsel %vm333, %v454, 0.0
    %458 = vadd.xlane.f32.xlu0 %v457
    %v459 = vpop.xlane.xlu0 %458
    %v460 = vsel %vm333, %v456, 0.0
    %461 = vadd.xlane.f32.xlu0 %v460
    %v462 = vpop.xlane.xlu0 %461
    %v463 = vrcp.pop %v459
    %v464 = vrcp.pop %v462
    %v465 = vmul.f32 %v454, %v463
    %v466 = vmul.f32 %v456, %v464
    %v467 = vmax.f32 %v354, %v465
    %v468 = vmax.f32 %v355, %v466
    %469 = vrot.lane.b32.xlu0 %v143, 64
    %v470 = vpop.permute.xlu0 %469
    %471 = vrot.lane.b32.xlu0 %v148, 64
    %v472 = vpop.permute.xlu0 %471
    %v476 = vsel %vm333, %v467, 0
    %v479 = vsel %vm333, %v468, 0
    %481 = vmatprep.subr.mxu0 0.0
    %482 = vmatpush1.msra.mxu0 %v470
    %483 = vmatprep.subr.mxu0 0.0
    %484 = vmatpush1.msra.mxu0 %v472
    %485 = vmatprep.subr.mxu0 0.0
    %486 = vmatpush1.msra.mxu0 0.0
    %487 = vmatprep.subr.mxu0 0.0
    %488 = vmatpush1.msra.mxu0 0.0
    %489 = vmatprep.subr.mxu0 0.0
    %490 = vmatpush1.msra.mxu0 0.0
    %491 = vmatprep.subr.mxu0 0.0
    %492 = vmatpush1.msra.mxu0 0.0
    %493 = vmatprep.subr.mxu0 0.0
    %494 = vmatpush1.msra.mxu0 0.0
    %495 = vmatprep.subr.mxu0 0.0
    %496 = vmatpush1.msra.mxu0 0.0
    %497 = vmatprep.subr.mxu0 0.0
    %498 = vmatpush1.msra.mxu0 0.0
    %499 = vmatprep.subr.mxu0 0.0
    %500 = vmatpush1.msra.mxu0 0.0
    %501 = vmatprep.subr.mxu0 0.0
    %502 = vmatpush1.msra.mxu0 0.0
    %503 = vmatprep.subr.mxu0 0.0
    %504 = vmatpush1.msra.mxu0 0.0
    %505 = vmatprep.subr.mxu0 0.0
    %506 = vmatpush1.msra.mxu0 0.0
    %507 = vmatprep.subr.mxu0 0.0
    %508 = vmatpush1.msra.mxu0 0.0
    %509 = vmatprep.subr.mxu0 0.0
    %510 = vmatpush1.msra.mxu0 0.0
    %511 = vmatprep.subr.mxu0 0.0
    %512 = vmatpush1.msra.mxu0 0.0
    %513 = vmatprep.subr.mxu0 0.0
    %514 = vmatpush1.msra.mxu0 0.0
    %515 = vmatprep.subr.mxu0 0.0
    %516 = vmatpush1.msra.mxu0 0.0
    %517 = vmatprep.subr.mxu0 0.0
    %518 = vmatpush1.msra.mxu0 0.0
    %519 = vmatprep.subr.mxu0 0.0
    %520 = vmatpush1.msra.mxu0 0.0
    %521 = vmatprep.subr.mxu0 0.0
    %522 = vmatpush1.msra.mxu0 0.0
    %523 = vmatprep.subr.mxu0 0.0
    %524 = vmatpush1.msra.mxu0 0.0
    %525 = vmatprep.subr.mxu0 0.0
    %526 = vmatpush1.msra.mxu0 0.0
    %527 = vmatprep.subr.mxu0 0.0
    %528 = vmatpush1.msra.mxu0 0.0
    %529 = vmatprep.subr.mxu0 0.0
    %530 = vmatpush1.msra.mxu0 0.0
    %531 = vmatprep.subr.mxu0 0.0
    %532 = vmatpush1.msra.mxu0 0.0
    %533 = vmatprep.subr.mxu0 0.0
    %534 = vmatpush1.msra.mxu0 0.0
    %535 = vmatprep.subr.mxu0 0.0
    %536 = vmatpush1.msra.mxu0 0.0
    %537 = vmatprep.subr.mxu0 0.0
    %538 = vmatpush1.msra.mxu0 0.0
    %539 = vmatprep.subr.mxu0 0.0
    %540 = vmatpush1.msra.mxu0 0.0
    %541 = vmatprep.subr.mxu0 0.0
    %542 = vmatpush1.msra.mxu0 0.0
    %543 = vmatprep.subr.mxu0 0.0
    %544 = vmatpush1.msra.mxu0 0.0
    %545 = vmatprep.mubr.f32.mxu0 0.0
    %546 = vmatmul.mubr.f32.gmra.mrb[0].mxu0 %v476
    %v547 = vpop.f32.mrb[0].mxu0
    %v548 = vadd.f32 0.0, %v547
    %v549 = vpop.f32.mrb[0].mxu0
    %550 = vmatprep.mubr.f32.mxu0 0.0
    %551 = vmatmul.mubr.f32.gmra.mrb[0].mxu0 %v479
    %v552 = vpop.f32.mrb[0].mxu0
    %v553 = vadd.f32 0.0, %v552
    %v554 = vpop.f32.mrb[0].mxu0
    %555 = vdwg.mxu0
    %v556 = vld [vmem:[#allocation5 + $0x40] sm:$0xff]
    %557 = vrot.lane.b32.xlu0 %v143, 120
    %v558 = vpop.permute.xlu0 %557
    %559 = vrot.lane.b32.xlu0 %v148, 120
    %v560 = vpop.permute.xlu0 %559
    %561 = vrot.lane.b32.xlu0 %v143, 88
    %v562 = vpop.permute.xlu0 %561
    %563 = vrot.lane.b32.xlu0 %v148, 88
    %v564 = vpop.permute.xlu0 %563
    %v565 = vsel %vm249, %v558, 0
    %v567 = vsel %vm249, %v560, 0
    %v569 = vsel %vm249, %v562, 0
    %v571 = vsel %vm249, %v564, 0
    %573 = vmatprep.subr.mxu0 0.0
    %574 = vmatpush1.xpose.msra.mxu0 %v569
    %575 = vmatprep.subr.mxu0 0.0
    %576 = vmatpush1.xpose.msra.mxu0 %v571
    %577 = vmatprep.subr.mxu0 0.0
    %578 = vmatpush1.xpose.msra.mxu0 0.0
    %579 = vmatprep.subr.mxu0 0.0
    %580 = vmatpush1.xpose.msra.mxu0 0.0
    %581 = vmatprep.subr.mxu0 0.0
    %582 = vmatpush1.xpose.msra.mxu0 0.0
    %583 = vmatprep.subr.mxu0 0.0
    %584 = vmatpush1.xpose.msra.mxu0 0.0
    %585 = vmatprep.subr.mxu0 0.0
    %586 = vmatpush1.xpose.msra.mxu0 0.0
    %587 = vmatprep.subr.mxu0 0.0
    %588 = vmatpush1.xpose.msra.mxu0 0.0
    %589 = vmatprep.subr.mxu0 0.0
    %590 = vmatpush1.xpose.msra.mxu0 0.0
    %591 = vmatprep.subr.mxu0 0.0
    %592 = vmatpush1.xpose.msra.mxu0 0.0
    %593 = vmatprep.subr.mxu0 0.0
    %594 = vmatpush1.xpose.msra.mxu0 0.0
    %595 = vmatprep.subr.mxu0 0.0
    %596 = vmatpush1.xpose.msra.mxu0 0.0
    %597 = vmatprep.subr.mxu0 0.0
    %598 = vmatpush1.xpose.msra.mxu0 0.0
    %599 = vmatprep.subr.mxu0 0.0
    %600 = vmatpush1.xpose.msra.mxu0 0.0
    %601 = vmatprep.subr.mxu0 0.0
    %602 = vmatpush1.xpose.msra.mxu0 0.0
    %603 = vmatprep.subr.mxu0 0.0
    %604 = vmatpush1.xpose.msra.mxu0 0.0
    %605 = vmatprep.subr.mxu0 0.0
    %606 = vmatpush1.xpose.msra.mxu0 0.0
    %607 = vmatprep.subr.mxu0 0.0
    %608 = vmatpush1.xpose.msra.mxu0 0.0
    %609 = vmatprep.subr.mxu0 0.0
    %610 = vmatpush1.xpose.msra.mxu0 0.0
    %611 = vmatprep.subr.mxu0 0.0
    %612 = vmatpush1.xpose.msra.mxu0 0.0
    %613 = vmatprep.subr.mxu0 0.0
    %614 = vmatpush1.xpose.msra.mxu0 0.0
    %615 = vmatprep.subr.mxu0 0.0
    %616 = vmatpush1.xpose.msra.mxu0 0.0
    %617 = vmatprep.subr.mxu0 0.0
    %618 = vmatpush1.xpose.msra.mxu0 0.0
    %619 = vmatprep.subr.mxu0 0.0
    %620 = vmatpush1.xpose.msra.mxu0 0.0
    %621 = vmatprep.subr.mxu0 0.0
    %622 = vmatpush1.xpose.msra.mxu0 0.0
    %623 = vmatprep.subr.mxu0 0.0
    %624 = vmatpush1.xpose.msra.mxu0 0.0
    %625 = vmatprep.subr.mxu0 0.0
    %626 = vmatpush1.xpose.msra.mxu0 0.0
    %627 = vmatprep.subr.mxu0 0.0
    %628 = vmatpush1.xpose.msra.mxu0 0.0
    %629 = vmatprep.subr.mxu0 0.0
    %630 = vmatpush1.xpose.msra.mxu0 0.0
    %631 = vmatprep.subr.mxu0 0.0
    %632 = vmatpush1.xpose.msra.mxu0 0.0
    %633 = vmatprep.subr.mxu0 0.0
    %634 = vmatpush1.xpose.msra.mxu0 0.0
    %635 = vmatprep.subr.mxu0 0.0
    %636 = vmatpush1.xpose.msra.mxu0 0.0
    %637 = vmatprep.mubr.f32.mxu0 0.0
    %638 = vmatmul.mubr.f32.gmra.mrb[0].mxu0 %v565
    %v639 = vpop.f32.mrb[0].mxu0
    %v640 = vadd.f32 %v58, %v639
    %v641 = vpop.f32.mrb[0].mxu0
    %642 = vmatprep.mubr.f32.mxu0 0.0
    %643 = vmatmul.mubr.f32.gmra.mrb[0].mxu0 %v567
    %v644 = vpop.f32.mrb[0].mxu0
    %v645 = vadd.f32 %v59, %v644
    %v646 = vpop.f32.mrb[0].mxu0
    %647 = vdwg.mxu0
    %v648 = vsel %vm333, %v640, -inf
    %649 = vmax.xlane.f32.xlu0 %v648
    %v650 = vpop.xlane.xlu0 %649
    %v651 = vsel %vm333, %v645, -inf
    %652 = vmax.xlane.f32.xlu0 %v651
    %v653 = vpop.xlane.xlu0 %652
    %v654 = vsub.f32 %v640, %v650
    %v655 = vsub.f32 %v645, %v653
    %v656 = vmul.f32 %v654, 1.442695
    %v657 = vpow.pop %v656
    %v658 = vmul.f32 %v655, 1.442695
    %v659 = vpow.pop %v658
    %v660 = vsel %vm333, %v657, 0.0
    %661 = vadd.xlane.f32.xlu0 %v660
    %v662 = vpop.xlane.xlu0 %661
    %v663 = vsel %vm333, %v659, 0.0
    %664 = vadd.xlane.f32.xlu0 %v663
    %v665 = vpop.xlane.xlu0 %664
    %v666 = vrcp.pop %v662
    %v667 = vrcp.pop %v665
    %v668 = vmul.f32 %v657, %v666
    %v669 = vmul.f32 %v659, %v667
    %670 = vrot.lane.b32.xlu0 %v235, 120
    %v671 = vpop.permute.xlu0 %670
    %672 = vrot.lane.b32.xlu0 %v240, 120
    %v673 = vpop.permute.xlu0 %672
    %674 = vrot.lane.b32.xlu0 %v235, 88
    %v675 = vpop.permute.xlu0 %674
    %676 = vrot.lane.b32.xlu0 %v240, 88
    %v677 = vpop.permute.xlu0 %676
    %v678 = vsel %vm249, %v671, 0
    %v680 = vsel %vm249, %v673, 0
    %v682 = vsel %vm249, %v675, 0
    %v684 = vsel %vm249, %v677, 0
    %686 = vmatprep.subr.mxu0 0.0
    %687 = vmatpush1.xpose.msra.mxu0 %v682
    %688 = vmatprep.subr.mxu0 0.0
    %689 = vmatpush1.xpose.msra.mxu0 %v684
    %690 = vmatprep.subr.mxu0 0.0
    %691 = vmatpush1.xpose.msra.mxu0 0.0
    %692 = vmatprep.subr.mxu0 0.0
    %693 = vmatpush1.xpose.msra.mxu0 0.0
    %694 = vmatprep.subr.mxu0 0.0
    %695 = vmatpush1.xpose.msra.mxu0 0.0
    %696 = vmatprep.subr.mxu0 0.0
    %697 = vmatpush1.xpose.msra.mxu0 0.0
    %698 = vmatprep.subr.mxu0 0.0
    %699 = vmatpush1.xpose.msra.mxu0 0.0
    %700 = vmatprep.subr.mxu0 0.0
    %701 = vmatpush1.xpose.msra.mxu0 0.0
    %702 = vmatprep.subr.mxu0 0.0
    %703 = vmatpush1.xpose.msra.mxu0 0.0
    %704 = vmatprep.subr.mxu0 0.0
    %705 = vmatpush1.xpose.msra.mxu0 0.0
    %706 = vmatprep.subr.mxu0 0.0
    %707 = vmatpush1.xpose.msra.mxu0 0.0
    %708 = vmatprep.subr.mxu0 0.0
    %709 = vmatpush1.xpose.msra.mxu0 0.0
    %710 = vmatprep.subr.mxu0 0.0
    %711 = vmatpush1.xpose.msra.mxu0 0.0
    %712 = vmatprep.subr.mxu0 0.0
    %713 = vmatpush1.xpose.msra.mxu0 0.0
    %714 = vmatprep.subr.mxu0 0.0
    %715 = vmatpush1.xpose.msra.mxu0 0.0
    %716 = vmatprep.subr.mxu0 0.0
    %717 = vmatpush1.xpose.msra.mxu0 0.0
    %718 = vmatprep.subr.mxu0 0.0
    %719 = vmatpush1.xpose.msra.mxu0 0.0
    %720 = vmatprep.subr.mxu0 0.0
    %721 = vmatpush1.xpose.msra.mxu0 0.0
    %722 = vmatprep.subr.mxu0 0.0
    %723 = vmatpush1.xpose.msra.mxu0 0.0
    %724 = vmatprep.subr.mxu0 0.0
    %725 = vmatpush1.xpose.msra.mxu0 0.0
    %726 = vmatprep.subr.mxu0 0.0
    %727 = vmatpush1.xpose.msra.mxu0 0.0
    %728 = vmatprep.subr.mxu0 0.0
    %729 = vmatpush1.xpose.msra.mxu0 0.0
    %730 = vmatprep.subr.mxu0 0.0
    %731 = vmatpush1.xpose.msra.mxu0 0.0
    %732 = vmatprep.subr.mxu0 0.0
    %733 = vmatpush1.xpose.msra.mxu0 0.0
    %734 = vmatprep.subr.mxu0 0.0
    %735 = vmatpush1.xpose.msra.mxu0 0.0
    %736 = vmatprep.subr.mxu0 0.0
    %737 = vmatpush1.xpose.msra.mxu0 0.0
    %738 = vmatprep.subr.mxu0 0.0
    %739 = vmatpush1.xpose.msra.mxu0 0.0
    %740 = vmatprep.subr.mxu0 0.0
    %741 = vmatpush1.xpose.msra.mxu0 0.0
    %742 = vmatprep.subr.mxu0 0.0
    %743 = vmatpush1.xpose.msra.mxu0 0.0
    %744 = vmatprep.subr.mxu0 0.0
    %745 = vmatpush1.xpose.msra.mxu0 0.0
    %746 = vmatprep.subr.mxu0 0.0
    %747 = vmatpush1.xpose.msra.mxu0 0.0
    %748 = vmatprep.subr.mxu0 0.0
    %749 = vmatpush1.xpose.msra.mxu0 0.0
    %750 = vmatprep.mubr.f32.mxu0 0.0
    %751 = vmatmul.mubr.f32.gmra.mrb[0].mxu0 %v678
    %v752 = vpop.f32.mrb[0].mxu0
    %v753 = vadd.f32 %v58, %v752
    %v754 = vpop.f32.mrb[0].mxu0
    %755 = vmatprep.mubr.f32.mxu0 0.0
    %756 = vmatmul.mubr.f32.gmra.mrb[0].mxu0 %v680
    %v757 = vpop.f32.mrb[0].mxu0
    %v758 = vadd.f32 %v59, %v757
    %v759 = vpop.f32.mrb[0].mxu0
    %760 = vdwg.mxu0
    %v761 = vsel %vm333, %v753, -inf
    %762 = vmax.xlane.f32.xlu0 %v761
    %v763 = vpop.xlane.xlu0 %762
    %v764 = vsel %vm333, %v758, -inf
    %765 = vmax.xlane.f32.xlu0 %v764
    %v766 = vpop.xlane.xlu0 %765
    %v767 = vsub.f32 %v753, %v763
    %v768 = vsub.f32 %v758, %v766
    %v769 = vmul.f32 %v767, 1.442695
    %v770 = vpow.pop %v769
    %v771 = vmul.f32 %v768, 1.442695
    %v772 = vpow.pop %v771
    %v773 = vsel %vm333, %v770, 0.0
    %774 = vadd.xlane.f32.xlu0 %v773
    %v775 = vpop.xlane.xlu0 %774
    %v776 = vsel %vm333, %v772, 0.0
    %777 = vadd.xlane.f32.xlu0 %v776
    %v778 = vpop.xlane.xlu0 %777
    %v779 = vrcp.pop %v775
    %v780 = vrcp.pop %v778
    %v781 = vmul.f32 %v770, %v779
    %v782 = vmul.f32 %v772, %v780
    %v783 = vmax.f32 %v668, %v781
    %v784 = vmax.f32 %v669, %v782
    %785 = vrot.lane.b32.xlu0 %v143, 56
    %v786 = vpop.permute.xlu0 %785
    %787 = vrot.lane.b32.xlu0 %v148, 56
    %v788 = vpop.permute.xlu0 %787
    %v792 = vsel %vm333, %v783, 0
    %v795 = vsel %vm333, %v784, 0
    %797 = vmatprep.subr.mxu0 0.0
    %798 = vmatpush1.msra.mxu0 %v786
    %799 = vmatprep.subr.mxu0 0.0
    %800 = vmatpush1.msra.mxu0 %v788
    %801 = vmatprep.subr.mxu0 0.0
    %802 = vmatpush1.msra.mxu0 0.0
    %803 = vmatprep.subr.mxu0 0.0
    %804 = vmatpush1.msra.mxu0 0.0
    %805 = vmatprep.subr.mxu0 0.0
    %806 = vmatpush1.msra.mxu0 0.0
    %807 = vmatprep.subr.mxu0 0.0
    %808 = vmatpush1.msra.mxu0 0.0
    %809 = vmatprep.subr.mxu0 0.0
    %810 = vmatpush1.msra.mxu0 0.0
    %811 = vmatprep.subr.mxu0 0.0
    %812 = vmatpush1.msra.mxu0 0.0
    %813 = vmatprep.subr.mxu0 0.0
    %814 = vmatpush1.msra.mxu0 0.0
    %815 = vmatprep.subr.mxu0 0.0
    %816 = vmatpush1.msra.mxu0 0.0
    %817 = vmatprep.subr.mxu0 0.0
    %818 = vmatpush1.msra.mxu0 0.0
    %819 = vmatprep.subr.mxu0 0.0
    %820 = vmatpush1.msra.mxu0 0.0
    %821 = vmatprep.subr.mxu0 0.0
    %822 = vmatpush1.msra.mxu0 0.0
    %823 = vmatprep.subr.mxu0 0.0
    %824 = vmatpush1.msra.mxu0 0.0
    %825 = vmatprep.subr.mxu0 0.0
    %826 = vmatpush1.msra.mxu0 0.0
    %827 = vmatprep.subr.mxu0 0.0
    %828 = vmatpush1.msra.mxu0 0.0
    %829 = vmatprep.subr.mxu0 0.0
    %830 = vmatpush1.msra.mxu0 0.0
    %831 = vmatprep.subr.mxu0 0.0
    %832 = vmatpush1.msra.mxu0 0.0
    %833 = vmatprep.subr.mxu0 0.0
    %834 = vmatpush1.msra.mxu0 0.0
    %835 = vmatprep.subr.mxu0 0.0
    %836 = vmatpush1.msra.mxu0 0.0
    %837 = vmatprep.subr.mxu0 0.0
    %838 = vmatpush1.msra.mxu0 0.0
    %839 = vmatprep.subr.mxu0 0.0
    %840 = vmatpush1.msra.mxu0 0.0
    %841 = vmatprep.subr.mxu0 0.0
    %842 = vmatpush1.msra.mxu0 0.0
    %843 = vmatprep.subr.mxu0 0.0
    %844 = vmatpush1.msra.mxu0 0.0
    %845 = vmatprep.subr.mxu0 0.0
    %846 = vmatpush1.msra.mxu0 0.0
    %847 = vmatprep.subr.mxu0 0.0
    %848 = vmatpush1.msra.mxu0 0.0
    %849 = vmatprep.subr.mxu0 0.0
    %850 = vmatpush1.msra.mxu0 0.0
    %851 = vmatprep.subr.mxu0 0.0
    %852 = vmatpush1.msra.mxu0 0.0
    %853 = vmatprep.subr.mxu0 0.0
    %854 = vmatpush1.msra.mxu0 0.0
    %855 = vmatprep.subr.mxu0 0.0
    %856 = vmatpush1.msra.mxu0 0.0
    %857 = vmatprep.subr.mxu0 0.0
    %858 = vmatpush1.msra.mxu0 0.0
    %859 = vmatprep.subr.mxu0 0.0
    %860 = vmatpush1.msra.mxu0 0.0
    %861 = vmatprep.mubr.f32.mxu0 0.0
    %862 = vmatmul.mubr.f32.gmra.mrb[0].mxu0 %v792
    %v863 = vpop.f32.mrb[0].mxu0
    %v864 = vadd.f32 0.0, %v863
    %v865 = vpop.f32.mrb[0].mxu0
    %866 = vmatprep.mubr.f32.mxu0 0.0
    %867 = vmatmul.mubr.f32.gmra.mrb[0].mxu0 %v795
    %v868 = vpop.f32.mrb[0].mxu0
    %v869 = vadd.f32 0.0, %v868
    %v870 = vpop.f32.mrb[0].mxu0
    %871 = vdwg.mxu0
    %v872 = vld [vmem:[#allocation5 + $0x48] sm:$0xff]
    %v874 = vsel %vm249, %v864, 0
    %v877 = vsel %vm249, %v869, 0
    %879 = vmatprep.subr.mxu0 0.0
    %880 = vmatpush1.msra.mxu0 %v872
    %881 = vmatprep.subr.mxu0 0.0
    %882 = vmatpush1.msra.mxu0 0.0
    %883 = vmatprep.subr.mxu0 0.0
    %884 = vmatpush1.msra.mxu0 0.0
    %885 = vmatprep.subr.mxu0 0.0
    %886 = vmatpush1.msra.mxu0 0.0
    %887 = vmatprep.subr.mxu0 0.0
    %888 = vmatpush1.msra.mxu0 0.0
    %889 = vmatprep.subr.mxu0 0.0
    %890 = vmatpush1.msra.mxu0 0.0
    %891 = vmatprep.subr.mxu0 0.0
    %892 = vmatpush1.msra.mxu0 0.0
    %893 = vmatprep.subr.mxu0 0.0
    %894 = vmatpush1.msra.mxu0 0.0
    %895 = vmatprep.subr.mxu0 0.0
    %896 = vmatpush1.msra.mxu0 0.0
    %897 = vmatprep.subr.mxu0 0.0
    %898 = vmatpush1.msra.mxu0 0.0
    %899 = vmatprep.subr.mxu0 0.0
    %900 = vmatpush1.msra.mxu0 0.0
    %901 = vmatprep.subr.mxu0 0.0
    %902 = vmatpush1.msra.mxu0 0.0
    %903 = vmatprep.subr.mxu0 0.0
    %904 = vmatpush1.msra.mxu0 0.0
    %905 = vmatprep.subr.mxu0 0.0
    %906 = vmatpush1.msra.mxu0 0.0
    %907 = vmatprep.subr.mxu0 0.0
    %908 = vmatpush1.msra.mxu0 0.0
    %909 = vmatprep.subr.mxu0 0.0
    %910 = vmatpush1.msra.mxu0 0.0
    %911 = vmatprep.subr.mxu0 0.0
    %912 = vmatpush1.msra.mxu0 0.0
    %913 = vmatprep.subr.mxu0 0.0
    %914 = vmatpush1.msra.mxu0 0.0
    %915 = vmatprep.subr.mxu0 0.0
    %916 = vmatpush1.msra.mxu0 0.0
    %917 = vmatprep.subr.mxu0 0.0
    %918 = vmatpush1.msra.mxu0 0.0
    %919 = vmatprep.subr.mxu0 0.0
    %920 = vmatpush1.msra.mxu0 0.0
    %921 = vmatprep.subr.mxu0 0.0
    %922 = vmatpush1.msra.mxu0 0.0
    %923 = vmatprep.subr.mxu0 0.0
    %924 = vmatpush1.msra.mxu0 0.0
    %925 = vmatprep.subr.mxu0 0.0
    %926 = vmatpush1.msra.mxu0 0.0
    %927 = vmatprep.subr.mxu0 0.0
    %928 = vmatpush1.msra.mxu0 0.0
    %929 = vmatprep.subr.mxu0 0.0
    %930 = vmatpush1.msra.mxu0 0.0
    %931 = vmatprep.subr.mxu0 0.0
    %932 = vmatpush1.msra.mxu0 0.0
    %933 = vmatprep.subr.mxu0 0.0
    %934 = vmatpush1.msra.mxu0 0.0
    %935 = vmatprep.subr.mxu0 0.0
    %936 = vmatpush1.msra.mxu0 0.0
    %937 = vmatprep.subr.mxu0 0.0
    %938 = vmatpush1.msra.mxu0 0.0
    %939 = vmatprep.subr.mxu0 0.0
    %940 = vmatpush1.msra.mxu0 0.0
    %941 = vmatprep.subr.mxu0 0.0
    %942 = vmatpush1.msra.mxu0 0.0
    %943 = vmatprep.mubr.f32.mxu0 0.0
    %944 = vmatmul.mubr.f32.gmra.mrb[0].mxu0 %v874
    %v945 = vpop.f32.mrb[0].mxu0
    %v946 = vadd.f32 0.0, %v945
    %v947 = vpop.f32.mrb[0].mxu0
    %948 = vmatprep.mubr.f32.mxu0 0.0
    %949 = vmatmul.mubr.f32.gmra.mrb[0].mxu0 %v877
    %v950 = vpop.f32.mrb[0].mxu0
    %v951 = vadd.f32 0.0, %v950
    %v952 = vpop.f32.mrb[0].mxu0
    %953 = vdwg.mxu0
    %v955 = vsel %vm249, %v548, 0
    %v958 = vsel %vm249, %v553, 0
    %960 = vmatprep.subr.mxu0 0.0
    %961 = vmatpush1.msra.mxu0 %v556
    %962 = vmatprep.subr.mxu0 0.0
    %963 = vmatpush1.msra.mxu0 0.0
    %964 = vmatprep.subr.mxu0 0.0
    %965 = vmatpush1.msra.mxu0 0.0
    %966 = vmatprep.subr.mxu0 0.0
    %967 = vmatpush1.msra.mxu0 0.0
    %968 = vmatprep.subr.mxu0 0.0
    %969 = vmatpush1.msra.mxu0 0.0
    %970 = vmatprep.subr.mxu0 0.0
    %971 = vmatpush1.msra.mxu0 0.0
    %972 = vmatprep.subr.mxu0 0.0
    %973 = vmatpush1.msra.mxu0 0.0
    %974 = vmatprep.subr.mxu0 0.0
    %975 = vmatpush1.msra.mxu0 0.0
    %976 = vmatprep.subr.mxu0 0.0
    %977 = vmatpush1.msra.mxu0 0.0
    %978 = vmatprep.subr.mxu0 0.0
    %979 = vmatpush1.msra.mxu0 0.0
    %980 = vmatprep.subr.mxu0 0.0
    %981 = vmatpush1.msra.mxu0 0.0
    %982 = vmatprep.subr.mxu0 0.0
    %983 = vmatpush1.msra.mxu0 0.0
    %984 = vmatprep.subr.mxu0 0.0
    %985 = vmatpush1.msra.mxu0 0.0
    %986 = vmatprep.subr.mxu0 0.0
    %987 = vmatpush1.msra.mxu0 0.0
    %988 = vmatprep.subr.mxu0 0.0
    %989 = vmatpush1.msra.mxu0 0.0
    %990 = vmatprep.subr.mxu0 0.0
    %991 = vmatpush1.msra.mxu0 0.0
    %992 = vmatprep.subr.mxu0 0.0
    %993 = vmatpush1.msra.mxu0 0.0
    %994 = vmatprep.subr.mxu0 0.0
    %995 = vmatpush1.msra.mxu0 0.0
    %996 = vmatprep.subr.mxu0 0.0
    %997 = vmatpush1.msra.mxu0 0.0
    %998 = vmatprep.subr.mxu0 0.0
    %999 = vmatpush1.msra.mxu0 0.0
    %1000 = vmatprep.subr.mxu0 0.0
    %1001 = vmatpush1.msra.mxu0 0.0
    %1002 = vmatprep.subr.mxu0 0.0
    %1003 = vmatpush1.msra.mxu0 0.0
    %1004 = vmatprep.subr.mxu0 0.0
    %1005 = vmatpush1.msra.mxu0 0.0
    %1006 = vmatprep.subr.mxu0 0.0
    %1007 = vmatpush1.msra.mxu0 0.0
    %1008 = vmatprep.subr.mxu0 0.0
    %1009 = vmatpush1.msra.mxu0 0.0
    %1010 = vmatprep.subr.mxu0 0.0
    %1011 = vmatpush1.msra.mxu0 0.0
    %1012 = vmatprep.subr.mxu0 0.0
    %1013 = vmatpush1.msra.mxu0 0.0
    %1014 = vmatprep.subr.mxu0 0.0
    %1015 = vmatpush1.msra.mxu0 0.0
    %1016 = vmatprep.subr.mxu0 0.0
    %1017 = vmatpush1.msra.mxu0 0.0
    %1018 = vmatprep.subr.mxu0 0.0
    %1019 = vmatpush1.msra.mxu0 0.0
    %1020 = vmatprep.subr.mxu0 0.0
    %1021 = vmatpush1.msra.mxu0 0.0
    %1022 = vmatprep.subr.mxu0 0.0
    %1023 = vmatpush1.msra.mxu0 0.0
    %1024 = vmatprep.mubr.f32.mxu0 0.0
    %1025 = vmatmul.mubr.f32.gmra.mrb[0].mxu0 %v955
    %v1026 = vpop.f32.mrb[0].mxu0
    %v1027 = vadd.f32 %v946, %v1026
    %v1028 = vpop.f32.mrb[0].mxu0
    %1029 = vmatprep.mubr.f32.mxu0 0.0
    %1030 = vmatmul.mubr.f32.gmra.mrb[0].mxu0 %v958
    %v1031 = vpop.f32.mrb[0].mxu0
    %v1032 = vadd.f32 %v951, %v1031
    %v1033 = vpop.f32.mrb[0].mxu0
    %1034 = vdwg.mxu0
    %1035 = vrot.lane.b32.xlu0 %v143, 112
    %v1036 = vpop.permute.xlu0 %1035
    %1037 = vrot.lane.b32.xlu0 %v148, 112
    %v1038 = vpop.permute.xlu0 %1037
    %1039 = vrot.lane.b32.xlu0 %v143, 80
    %v1040 = vpop.permute.xlu0 %1039
    %1041 = vrot.lane.b32.xlu0 %v148, 80
    %v1042 = vpop.permute.xlu0 %1041
    %v1043 = vsel %vm249, %v1036, 0
    %v1045 = vsel %vm249, %v1038, 0
    %v1047 = vsel %vm249, %v1040, 0
    %v1049 = vsel %vm249, %v1042, 0
    %1051 = vmatprep.subr.mxu0 0.0
    %1052 = vmatpush1.xpose.msra.mxu0 %v1047
    %1053 = vmatprep.subr.mxu0 0.0
    %1054 = vmatpush1.xpose.msra.mxu0 %v1049
    %1055 = vmatprep.subr.mxu0 0.0
    %1056 = vmatpush1.xpose.msra.mxu0 0.0
    %1057 = vmatprep.subr.mxu0 0.0
    %1058 = vmatpush1.xpose.msra.mxu0 0.0
    %1059 = vmatprep.subr.mxu0 0.0
    %1060 = vmatpush1.xpose.msra.mxu0 0.0
    %1061 = vmatprep.subr.mxu0 0.0
    %1062 = vmatpush1.xpose.msra.mxu0 0.0
    %1063 = vmatprep.subr.mxu0 0.0
    %1064 = vmatpush1.xpose.msra.mxu0 0.0
    %1065 = vmatprep.subr.mxu0 0.0
    %1066 = vmatpush1.xpose.msra.mxu0 0.0
    %1067 = vmatprep.subr.mxu0 0.0
    %1068 = vmatpush1.xpose.msra.mxu0 0.0
    %1069 = vmatprep.subr.mxu0 0.0
    %1070 = vmatpush1.xpose.msra.mxu0 0.0
    %1071 = vmatprep.subr.mxu0 0.0
    %1072 = vmatpush1.xpose.msra.mxu0 0.0
    %1073 = vmatprep.subr.mxu0 0.0
    %1074 = vmatpush1.xpose.msra.mxu0 0.0
    %1075 = vmatprep.subr.mxu0 0.0
    %1076 = vmatpush1.xpose.msra.mxu0 0.0
    %1077 = vmatprep.subr.mxu0 0.0
    %1078 = vmatpush1.xpose.msra.mxu0 0.0
    %1079 = vmatprep.subr.mxu0 0.0
    %1080 = vmatpush1.xpose.msra.mxu0 0.0
    %1081 = vmatprep.subr.mxu0 0.0
    %1082 = vmatpush1.xpose.msra.mxu0 0.0
    %1083 = vmatprep.subr.mxu0 0.0
    %1084 = vmatpush1.xpose.msra.mxu0 0.0
    %1085 = vmatprep.subr.mxu0 0.0
    %1086 = vmatpush1.xpose.msra.mxu0 0.0
    %1087 = vmatprep.subr.mxu0 0.0
    %1088 = vmatpush1.xpose.msra.mxu0 0.0
    %1089 = vmatprep.subr.mxu0 0.0
    %1090 = vmatpush1.xpose.msra.mxu0 0.0
    %1091 = vmatprep.subr.mxu0 0.0
    %1092 = vmatpush1.xpose.msra.mxu0 0.0
    %1093 = vmatprep.subr.mxu0 0.0
    %1094 = vmatpush1.xpose.msra.mxu0 0.0
    %1095 = vmatprep.subr.mxu0 0.0
    %1096 = vmatpush1.xpose.msra.mxu0 0.0
    %1097 = vmatprep.subr.mxu0 0.0
    %1098 = vmatpush1.xpose.msra.mxu0 0.0
    %1099 = vmatprep.subr.mxu0 0.0
    %1100 = vmatpush1.xpose.msra.mxu0 0.0
    %1101 = vmatprep.subr.mxu0 0.0
    %1102 = vmatpush1.xpose.msra.mxu0 0.0
    %1103 = vmatprep.subr.mxu0 0.0
    %1104 = vmatpush1.xpose.msra.mxu0 0.0
    %1105 = vmatprep.subr.mxu0 0.0
    %1106 = vmatpush1.xpose.msra.mxu0 0.0
    %1107 = vmatprep.subr.mxu0 0.0
    %1108 = vmatpush1.xpose.msra.mxu0 0.0
    %1109 = vmatprep.subr.mxu0 0.0
    %1110 = vmatpush1.xpose.msra.mxu0 0.0
    %1111 = vmatprep.subr.mxu0 0.0
    %1112 = vmatpush1.xpose.msra.mxu0 0.0
    %1113 = vmatprep.subr.mxu0 0.0
    %1114 = vmatpush1.xpose.msra.mxu0 0.0
    %1115 = vmatprep.mubr.f32.mxu0 0.0
    %1116 = vmatmul.mubr.f32.gmra.mrb[0].mxu0 %v1043
    %v1117 = vpop.f32.mrb[0].mxu0
    %v1118 = vadd.f32 %v58, %v1117
    %v1119 = vpop.f32.mrb[0].mxu0
    %1120 = vmatprep.mubr.f32.mxu0 0.0
    %1121 = vmatmul.mubr.f32.gmra.mrb[0].mxu0 %v1045
    %v1122 = vpop.f32.mrb[0].mxu0
    %v1123 = vadd.f32 %v59, %v1122
    %v1124 = vpop.f32.mrb[0].mxu0
    %1125 = vdwg.mxu0
    %v1126 = vsel %vm333, %v1118, -inf
    %1127 = vmax.xlane.f32.xlu0 %v1126
    %v1128 = vpop.xlane.xlu0 %1127
    %v1129 = vsel %vm333, %v1123, -inf
    %1130 = vmax.xlane.f32.xlu0 %v1129
    %v1131 = vpop.xlane.xlu0 %1130
    %v1132 = vsub.f32 %v1118, %v1128
    %v1133 = vsub.f32 %v1123, %v1131
    %v1134 = vmul.f32 %v1132, 1.442695
    %v1135 = vpow.pop %v1134
    %v1136 = vmul.f32 %v1133, 1.442695
    %v1137 = vpow.pop %v1136
    %v1138 = vsel %vm333, %v1135, 0.0
    %1139 = vadd.xlane.f32.xlu0 %v1138
    %v1140 = vpop.xlane.xlu0 %1139
    %v1141 = vsel %vm333, %v1137, 0.0
    %1142 = vadd.xlane.f32.xlu0 %v1141
    %v1143 = vpop.xlane.xlu0 %1142
    %v1144 = vrcp.pop %v1140
    %v1145 = vrcp.pop %v1143
    %v1146 = vmul.f32 %v1135, %v1144
    %v1147 = vmul.f32 %v1137, %v1145
    %1148 = vrot.lane.b32.xlu0 %v235, 112
    %v1149 = vpop.permute.xlu0 %1148
    %1150 = vrot.lane.b32.xlu0 %v240, 112
    %v1151 = vpop.permute.xlu0 %1150
    %1152 = vrot.lane.b32.xlu0 %v235, 80
    %v1153 = vpop.permute.xlu0 %1152
    %1154 = vrot.lane.b32.xlu0 %v240, 80
    %v1155 = vpop.permute.xlu0 %1154
    %v1156 = vsel %vm249, %v1149, 0
    %v1158 = vsel %vm249, %v1151, 0
    %v1160 = vsel %vm249, %v1153, 0
    %v1162 = vsel %vm249, %v1155, 0
    %1164 = vmatprep.subr.mxu0 0.0
    %1165 = vmatpush1.xpose.msra.mxu0 %v1160
    %1166 = vmatprep.subr.mxu0 0.0
    %1167 = vmatpush1.xpose.msra.mxu0 %v1162
    %1168 = vmatprep.subr.mxu0 0.0
    %1169 = vmatpush1.xpose.msra.mxu0 0.0
    %1170 = vmatprep.subr.mxu0 0.0
    %1171 = vmatpush1.xpose.msra.mxu0 0.0
    %1172 = vmatprep.subr.mxu0 0.0
    %1173 = vmatpush1.xpose.msra.mxu0 0.0
    %1174 = vmatprep.subr.mxu0 0.0
    %1175 = vmatpush1.xpose.msra.mxu0 0.0
    %1176 = vmatprep.subr.mxu0 0.0
    %1177 = vmatpush1.xpose.msra.mxu0 0.0
    %1178 = vmatprep.subr.mxu0 0.0
    %1179 = vmatpush1.xpose.msra.mxu0 0.0
    %1180 = vmatprep.subr.mxu0 0.0
    %1181 = vmatpush1.xpose.msra.mxu0 0.0
    %1182 = vmatprep.subr.mxu0 0.0
    %1183 = vmatpush1.xpose.msra.mxu0 0.0
    %1184 = vmatprep.subr.mxu0 0.0
    %1185 = vmatpush1.xpose.msra.mxu0 0.0
    %1186 = vmatprep.subr.mxu0 0.0
    %1187 = vmatpush1.xpose.msra.mxu0 0.0
    %1188 = vmatprep.subr.mxu0 0.0
    %1189 = vmatpush1.xpose.msra.mxu0 0.0
    %1190 = vmatprep.subr.mxu0 0.0
    %1191 = vmatpush1.xpose.msra.mxu0 0.0
    %1192 = vmatprep.subr.mxu0 0.0
    %1193 = vmatpush1.xpose.msra.mxu0 0.0
    %1194 = vmatprep.subr.mxu0 0.0
    %1195 = vmatpush1.xpose.msra.mxu0 0.0
    %1196 = vmatprep.subr.mxu0 0.0
    %1197 = vmatpush1.xpose.msra.mxu0 0.0
    %1198 = vmatprep.subr.mxu0 0.0
    %1199 = vmatpush1.xpose.msra.mxu0 0.0
    %1200 = vmatprep.subr.mxu0 0.0
    %1201 = vmatpush1.xpose.msra.mxu0 0.0
    %1202 = vmatprep.subr.mxu0 0.0
    %1203 = vmatpush1.xpose.msra.mxu0 0.0
    %1204 = vmatprep.subr.mxu0 0.0
    %1205 = vmatpush1.xpose.msra.mxu0 0.0
    %1206 = vmatprep.subr.mxu0 0.0
    %1207 = vmatpush1.xpose.msra.mxu0 0.0
    %1208 = vmatprep.subr.mxu0 0.0
    %1209 = vmatpush1.xpose.msra.mxu0 0.0
    %1210 = vmatprep.subr.mxu0 0.0
    %1211 = vmatpush1.xpose.msra.mxu0 0.0
    %1212 = vmatprep.subr.mxu0 0.0
    %1213 = vmatpush1.xpose.msra.mxu0 0.0
    %1214 = vmatprep.subr.mxu0 0.0
    %1215 = vmatpush1.xpose.msra.mxu0 0.0
    %1216 = vmatprep.subr.mxu0 0.0
    %1217 = vmatpush1.xpose.msra.mxu0 0.0
    %1218 = vmatprep.subr.mxu0 0.0
    %1219 = vmatpush1.xpose.msra.mxu0 0.0
    %1220 = vmatprep.subr.mxu0 0.0
    %1221 = vmatpush1.xpose.msra.mxu0 0.0
    %1222 = vmatprep.subr.mxu0 0.0
    %1223 = vmatpush1.xpose.msra.mxu0 0.0
    %1224 = vmatprep.subr.mxu0 0.0
    %1225 = vmatpush1.xpose.msra.mxu0 0.0
    %1226 = vmatprep.subr.mxu0 0.0
    %1227 = vmatpush1.xpose.msra.mxu0 0.0
    %1228 = vmatprep.mubr.f32.mxu0 0.0
    %1229 = vmatmul.mubr.f32.gmra.mrb[0].mxu0 %v1156
    %v1230 = vpop.f32.mrb[0].mxu0
    %v1231 = vadd.f32 %v58, %v1230
    %v1232 = vpop.f32.mrb[0].mxu0
    %1233 = vmatprep.mubr.f32.mxu0 0.0
    %1234 = vmatmul.mubr.f32.gmra.mrb[0].mxu0 %v1158
    %v1235 = vpop.f32.mrb[0].mxu0
    %v1236 = vadd.f32 %v59, %v1235
    %v1237 = vpop.f32.mrb[0].mxu0
    %1238 = vdwg.mxu0
    %v1239 = vsel %vm333, %v1231, -inf
    %1240 = vmax.xlane.f32.xlu0 %v1239
    %v1241 = vpop.xlane.xlu0 %1240
    %v1242 = vsel %vm333, %v1236, -inf
    %1243 = vmax.xlane.f32.xlu0 %v1242
    %v1244 = vpop.xlane.xlu0 %1243
    %v1245 = vsub.f32 %v1231, %v1241
    %v1246 = vsub.f32 %v1236, %v1244
    %v1247 = vmul.f32 %v1245, 1.442695
    %v1248 = vpow.pop %v1247
    %v1249 = vmul.f32 %v1246, 1.442695
    %v1250 = vpow.pop %v1249
    %v1251 = vsel %vm333, %v1248, 0.0
    %1252 = vadd.xlane.f32.xlu0 %v1251
    %v1253 = vpop.xlane.xlu0 %1252
    %v1254 = vsel %vm333, %v1250, 0.0
    %1255 = vadd.xlane.f32.xlu0 %v1254
    %v1256 = vpop.xlane.xlu0 %1255
    %v1257 = vrcp.pop %v1253
    %v1258 = vrcp.pop %v1256
    %v1259 = vmul.f32 %v1248, %v1257
    %v1260 = vmul.f32 %v1250, %v1258
    %v1261 = vmax.f32 %v1146, %v1259
    %v1262 = vmax.f32 %v1147, %v1260
    %1263 = vrot.lane.b32.xlu0 %v143, 48
    %v1264 = vpop.permute.xlu0 %1263
    %1265 = vrot.lane.b32.xlu0 %v148, 48
    %v1266 = vpop.permute.xlu0 %1265
    %v1270 = vsel %vm333, %v1261, 0
    %v1273 = vsel %vm333, %v1262, 0
    %1275 = vmatprep.subr.mxu0 0.0
    %1276 = vmatpush1.msra.mxu0 %v1264
    %1277 = vmatprep.subr.mxu0 0.0
    %1278 = vmatpush1.msra.mxu0 %v1266
    %1279 = vmatprep.subr.mxu0 0.0
    %1280 = vmatpush1.msra.mxu0 0.0
    %1281 = vmatprep.subr.mxu0 0.0
    %1282 = vmatpush1.msra.mxu0 0.0
    %1283 = vmatprep.subr.mxu0 0.0
    %1284 = vmatpush1.msra.mxu0 0.0
    %1285 = vmatprep.subr.mxu0 0.0
    %1286 = vmatpush1.msra.mxu0 0.0
    %1287 = vmatprep.subr.mxu0 0.0
    %1288 = vmatpush1.msra.mxu0 0.0
    %1289 = vmatprep.subr.mxu0 0.0
    %1290 = vmatpush1.msra.mxu0 0.0
    %1291 = vmatprep.subr.mxu0 0.0
    %1292 = vmatpush1.msra.mxu0 0.0
    %1293 = vmatprep.subr.mxu0 0.0
    %1294 = vmatpush1.msra.mxu0 0.0
    %1295 = vmatprep.subr.mxu0 0.0
    %1296 = vmatpush1.msra.mxu0 0.0
    %1297 = vmatprep.subr.mxu0 0.0
    %1298 = vmatpush1.msra.mxu0 0.0
    %1299 = vmatprep.subr.mxu0 0.0
    %1300 = vmatpush1.msra.mxu0 0.0
    %1301 = vmatprep.subr.mxu0 0.0
    %1302 = vmatpush1.msra.mxu0 0.0
    %1303 = vmatprep.subr.mxu0 0.0
    %1304 = vmatpush1.msra.mxu0 0.0
    %1305 = vmatprep.subr.mxu0 0.0
    %1306 = vmatpush1.msra.mxu0 0.0
    %1307 = vmatprep.subr.mxu0 0.0
    %1308 = vmatpush1.msra.mxu0 0.0
    %1309 = vmatprep.subr.mxu0 0.0
    %1310 = vmatpush1.msra.mxu0 0.0
    %1311 = vmatprep.subr.mxu0 0.0
    %1312 = vmatpush1.msra.mxu0 0.0
    %1313 = vmatprep.subr.mxu0 0.0
    %1314 = vmatpush1.msra.mxu0 0.0
    %1315 = vmatprep.subr.mxu0 0.0
    %1316 = vmatpush1.msra.mxu0 0.0
    %1317 = vmatprep.subr.mxu0 0.0
    %1318 = vmatpush1.msra.mxu0 0.0
    %1319 = vmatprep.subr.mxu0 0.0
    %1320 = vmatpush1.msra.mxu0 0.0
    %1321 = vmatprep.subr.mxu0 0.0
    %1322 = vmatpush1.msra.mxu0 0.0
    %1323 = vmatprep.subr.mxu0 0.0
    %1324 = vmatpush1.msra.mxu0 0.0
    %1325 = vmatprep.subr.mxu0 0.0
    %1326 = vmatpush1.msra.mxu0 0.0
    %1327 = vmatprep.subr.mxu0 0.0
    %1328 = vmatpush1.msra.mxu0 0.0
    %1329 = vmatprep.subr.mxu0 0.0
    %1330 = vmatpush1.msra.mxu0 0.0
    %1331 = vmatprep.subr.mxu0 0.0
    %1332 = vmatpush1.msra.mxu0 0.0
    %1333 = vmatprep.subr.mxu0 0.0
    %1334 = vmatpush1.msra.mxu0 0.0
    %1335 = vmatprep.subr.mxu0 0.0
    %1336 = vmatpush1.msra.mxu0 0.0
    %1337 = vmatprep.subr.mxu0 0.0
    %1338 = vmatpush1.msra.mxu0 0.0
    %1339 = vmatprep.mubr.f32.mxu0 0.0
    %1340 = vmatmul.mubr.f32.gmra.mrb[0].mxu0 %v1270
    %v1341 = vpop.f32.mrb[0].mxu0
    %v1342 = vadd.f32 0.0, %v1341
    %v1343 = vpop.f32.mrb[0].mxu0
    %1344 = vmatprep.mubr.f32.mxu0 0.0
    %1345 = vmatmul.mubr.f32.gmra.mrb[0].mxu0 %v1273
    %v1346 = vpop.f32.mrb[0].mxu0
    %v1347 = vadd.f32 0.0, %v1346
    %v1348 = vpop.f32.mrb[0].mxu0
    %1349 = vdwg.mxu0
    %v1350 = vld [vmem:[#allocation5 + $0x50] sm:$0xff]
    %v1352 = vsel %vm249, %v1342, 0
    %v1355 = vsel %vm249, %v1347, 0
    %1357 = vmatprep.subr.mxu0 0.0
    %1358 = vmatpush1.msra.mxu0 %v1350
    %1359 = vmatprep.subr.mxu0 0.0
    %1360 = vmatpush1.msra.mxu0 0.0
    %1361 = vmatprep.subr.mxu0 0.0
    %1362 = vmatpush1.msra.mxu0 0.0
    %1363 = vmatprep.subr.mxu0 0.0
    %1364 = vmatpush1.msra.mxu0 0.0
    %1365 = vmatprep.subr.mxu0 0.0
    %1366 = vmatpush1.msra.mxu0 0.0
    %1367 = vmatprep.subr.mxu0 0.0
    %1368 = vmatpush1.msra.mxu0 0.0
    %1369 = vmatprep.subr.mxu0 0.0
    %1370 = vmatpush1.msra.mxu0 0.0
    %1371 = vmatprep.subr.mxu0 0.0
    %1372 = vmatpush1.msra.mxu0 0.0
    %1373 = vmatprep.subr.mxu0 0.0
    %1374 = vmatpush1.msra.mxu0 0.0
    %1375 = vmatprep.subr.mxu0 0.0
    %1376 = vmatpush1.msra.mxu0 0.0
    %1377 = vmatprep.subr.mxu0 0.0
    %1378 = vmatpush1.msra.mxu0 0.0
    %1379 = vmatprep.subr.mxu0 0.0
    %1380 = vmatpush1.msra.mxu0 0.0
    %1381 = vmatprep.subr.mxu0 0.0
    %1382 = vmatpush1.msra.mxu0 0.0
    %1383 = vmatprep.subr.mxu0 0.0
    %1384 = vmatpush1.msra.mxu0 0.0
    %1385 = vmatprep.subr.mxu0 0.0
    %1386 = vmatpush1.msra.mxu0 0.0
    %1387 = vmatprep.subr.mxu0 0.0
    %1388 = vmatpush1.msra.mxu0 0.0
    %1389 = vmatprep.subr.mxu0 0.0
    %1390 = vmatpush1.msra.mxu0 0.0
    %1391 = vmatprep.subr.mxu0 0.0
    %1392 = vmatpush1.msra.mxu0 0.0
    %1393 = vmatprep.subr.mxu0 0.0
    %1394 = vmatpush1.msra.mxu0 0.0
    %1395 = vmatprep.subr.mxu0 0.0
    %1396 = vmatpush1.msra.mxu0 0.0
    %1397 = vmatprep.subr.mxu0 0.0
    %1398 = vmatpush1.msra.mxu0 0.0
    %1399 = vmatprep.subr.mxu0 0.0
    %1400 = vmatpush1.msra.mxu0 0.0
    %1401 = vmatprep.subr.mxu0 0.0
    %1402 = vmatpush1.msra.mxu0 0.0
    %1403 = vmatprep.subr.mxu0 0.0
    %1404 = vmatpush1.msra.mxu0 0.0
    %1405 = vmatprep.subr.mxu0 0.0
    %1406 = vmatpush1.msra.mxu0 0.0
    %1407 = vmatprep.subr.mxu0 0.0
    %1408 = vmatpush1.msra.mxu0 0.0
    %1409 = vmatprep.subr.mxu0 0.0
    %1410 = vmatpush1.msra.mxu0 0.0
    %1411 = vmatprep.subr.mxu0 0.0
    %1412 = vmatpush1.msra.mxu0 0.0
    %1413 = vmatprep.subr.mxu0 0.0
    %1414 = vmatpush1.msra.mxu0 0.0
    %1415 = vmatprep.subr.mxu0 0.0
    %1416 = vmatpush1.msra.mxu0 0.0
    %1417 = vmatprep.subr.mxu0 0.0
    %1418 = vmatpush1.msra.mxu0 0.0
    %1419 = vmatprep.subr.mxu0 0.0
    %1420 = vmatpush1.msra.mxu0 0.0
    %1421 = vmatprep.mubr.f32.mxu0 0.0
    %1422 = vmatmul.mubr.f32.gmra.mrb[0].mxu0 %v1352
    %v1423 = vpop.f32.mrb[0].mxu0
    %v1424 = vadd.f32 0.0, %v1423
    %v1425 = vpop.f32.mrb[0].mxu0
    %1426 = vmatprep.mubr.f32.mxu0 0.0
    %1427 = vmatmul.mubr.f32.gmra.mrb[0].mxu0 %v1355
    %v1428 = vpop.f32.mrb[0].mxu0
    %v1429 = vadd.f32 0.0, %v1428
    %v1430 = vpop.f32.mrb[0].mxu0
    %1431 = vdwg.mxu0
    %v1432 = vadd.f32 %v1027, %v1424
    %v1433 = vadd.f32 %v1032, %v1429
    %1434 = vrot.lane.b32.xlu0 %v143, 104
    %v1435 = vpop.permute.xlu0 %1434
    %1436 = vrot.lane.b32.xlu0 %v148, 104
    %v1437 = vpop.permute.xlu0 %1436
    %1438 = vrot.lane.b32.xlu0 %v143, 72
    %v1439 = vpop.permute.xlu0 %1438
    %1440 = vrot.lane.b32.xlu0 %v148, 72
    %v1441 = vpop.permute.xlu0 %1440
    %v1442 = vsel %vm249, %v1435, 0
    %v1444 = vsel %vm249, %v1437, 0
    %v1446 = vsel %vm249, %v1439, 0
    %v1448 = vsel %vm249, %v1441, 0
    %1450 = vmatprep.subr.mxu0 0.0
    %1451 = vmatpush1.xpose.msra.mxu0 %v1446
    %1452 = vmatprep.subr.mxu0 0.0
    %1453 = vmatpush1.xpose.msra.mxu0 %v1448
    %1454 = vmatprep.subr.mxu0 0.0
    %1455 = vmatpush1.xpose.msra.mxu0 0.0
    %1456 = vmatprep.subr.mxu0 0.0
    %1457 = vmatpush1.xpose.msra.mxu0 0.0
    %1458 = vmatprep.subr.mxu0 0.0
    %1459 = vmatpush1.xpose.msra.mxu0 0.0
    %1460 = vmatprep.subr.mxu0 0.0
    %1461 = vmatpush1.xpose.msra.mxu0 0.0
    %1462 = vmatprep.subr.mxu0 0.0
    %1463 = vmatpush1.xpose.msra.mxu0 0.0
    %1464 = vmatprep.subr.mxu0 0.0
    %1465 = vmatpush1.xpose.msra.mxu0 0.0
    %1466 = vmatprep.subr.mxu0 0.0
    %1467 = vmatpush1.xpose.msra.mxu0 0.0
    %1468 = vmatprep.subr.mxu0 0.0
    %1469 = vmatpush1.xpose.msra.mxu0 0.0
    %1470 = vmatprep.subr.mxu0 0.0
    %1471 = vmatpush1.xpose.msra.mxu0 0.0
    %1472 = vmatprep.subr.mxu0 0.0
    %1473 = vmatpush1.xpose.msra.mxu0 0.0
    %1474 = vmatprep.subr.mxu0 0.0
    %1475 = vmatpush1.xpose.msra.mxu0 0.0
    %1476 = vmatprep.subr.mxu0 0.0
    %1477 = vmatpush1.xpose.msra.mxu0 0.0
    %1478 = vmatprep.subr.mxu0 0.0
    %1479 = vmatpush1.xpose.msra.mxu0 0.0
    %1480 = vmatprep.subr.mxu0 0.0
    %1481 = vmatpush1.xpose.msra.mxu0 0.0
    %1482 = vmatprep.subr.mxu0 0.0
    %1483 = vmatpush1.xpose.msra.mxu0 0.0
    %1484 = vmatprep.subr.mxu0 0.0
    %1485 = vmatpush1.xpose.msra.mxu0 0.0
    %1486 = vmatprep.subr.mxu0 0.0
    %1487 = vmatpush1.xpose.msra.mxu0 0.0
    %1488 = vmatprep.subr.mxu0 0.0
    %1489 = vmatpush1.xpose.msra.mxu0 0.0
    %1490 = vmatprep.subr.mxu0 0.0
    %1491 = vmatpush1.xpose.msra.mxu0 0.0
    %1492 = vmatprep.subr.mxu0 0.0
    %1493 = vmatpush1.xpose.msra.mxu0 0.0
    %1494 = vmatprep.subr.mxu0 0.0
    %1495 = vmatpush1.xpose.msra.mxu0 0.0
    %1496 = vmatprep.subr.mxu0 0.0
    %1497 = vmatpush1.xpose.msra.mxu0 0.0
    %1498 = vmatprep.subr.mxu0 0.0
    %1499 = vmatpush1.xpose.msra.mxu0 0.0
    %1500 = vmatprep.subr.mxu0 0.0
    %1501 = vmatpush1.xpose.msra.mxu0 0.0
    %1502 = vmatprep.subr.mxu0 0.0
    %1503 = vmatpush1.xpose.msra.mxu0 0.0
    %1504 = vmatprep.subr.mxu0 0.0
    %1505 = vmatpush1.xpose.msra.mxu0 0.0
    %1506 = vmatprep.subr.mxu0 0.0
    %1507 = vmatpush1.xpose.msra.mxu0 0.0
    %1508 = vmatprep.subr.mxu0 0.0
    %1509 = vmatpush1.xpose.msra.mxu0 0.0
    %1510 = vmatprep.subr.mxu0 0.0
    %1511 = vmatpush1.xpose.msra.mxu0 0.0
    %1512 = vmatprep.subr.mxu0 0.0
    %1513 = vmatpush1.xpose.msra.mxu0 0.0
    %1514 = vmatprep.mubr.f32.mxu0 0.0
    %1515 = vmatmul.mubr.f32.gmra.mrb[0].mxu0 %v1442
    %v1516 = vpop.f32.mrb[0].mxu0
    %v1517 = vadd.f32 %v58, %v1516
    %v1518 = vpop.f32.mrb[0].mxu0
    %1519 = vmatprep.mubr.f32.mxu0 0.0
    %1520 = vmatmul.mubr.f32.gmra.mrb[0].mxu0 %v1444
    %v1521 = vpop.f32.mrb[0].mxu0
    %v1522 = vadd.f32 %v59, %v1521
    %v1523 = vpop.f32.mrb[0].mxu0
    %1524 = vdwg.mxu0
    %v1525 = vsel %vm333, %v1517, -inf
    %1526 = vmax.xlane.f32.xlu0 %v1525
    %v1527 = vpop.xlane.xlu0 %1526
    %v1528 = vsel %vm333, %v1522, -inf
    %1529 = vmax.xlane.f32.xlu0 %v1528
    %v1530 = vpop.xlane.xlu0 %1529
    %v1531 = vsub.f32 %v1517, %v1527
    %v1532 = vsub.f32 %v1522, %v1530
    %v1533 = vmul.f32 %v1531, 1.442695
    %v1534 = vpow.pop %v1533
    %v1535 = vmul.f32 %v1532, 1.442695
    %v1536 = vpow.pop %v1535
    %v1537 = vsel %vm333, %v1534, 0.0
    %1538 = vadd.xlane.f32.xlu0 %v1537
    %v1539 = vpop.xlane.xlu0 %1538
    %v1540 = vsel %vm333, %v1536, 0.0
    %1541 = vadd.xlane.f32.xlu0 %v1540
    %v1542 = vpop.xlane.xlu0 %1541
    %v1543 = vrcp.pop %v1539
    %v1544 = vrcp.pop %v1542
    %v1545 = vmul.f32 %v1534, %v1543
    %v1546 = vmul.f32 %v1536, %v1544
    %1547 = vrot.lane.b32.xlu0 %v235, 104
    %v1548 = vpop.permute.xlu0 %1547
    %1549 = vrot.lane.b32.xlu0 %v240, 104
    %v1550 = vpop.permute.xlu0 %1549
    %1551 = vrot.lane.b32.xlu0 %v235, 72
    %v1552 = vpop.permute.xlu0 %1551
    %1553 = vrot.lane.b32.xlu0 %v240, 72
    %v1554 = vpop.permute.xlu0 %1553
    %v1555 = vsel %vm249, %v1548, 0
    %v1557 = vsel %vm249, %v1550, 0
    %v1559 = vsel %vm249, %v1552, 0
    %v1561 = vsel %vm249, %v1554, 0
    %1563 = vmatprep.subr.mxu0 0.0
    %1564 = vmatpush1.xpose.msra.mxu0 %v1559
    %1565 = vmatprep.subr.mxu0 0.0
    %1566 = vmatpush1.xpose.msra.mxu0 %v1561
    %1567 = vmatprep.subr.mxu0 0.0
    %1568 = vmatpush1.xpose.msra.mxu0 0.0
    %1569 = vmatprep.subr.mxu0 0.0
    %1570 = vmatpush1.xpose.msra.mxu0 0.0
    %1571 = vmatprep.subr.mxu0 0.0
    %1572 = vmatpush1.xpose.msra.mxu0 0.0
    %1573 = vmatprep.subr.mxu0 0.0
    %1574 = vmatpush1.xpose.msra.mxu0 0.0
    %1575 = vmatprep.subr.mxu0 0.0
    %1576 = vmatpush1.xpose.msra.mxu0 0.0
    %1577 = vmatprep.subr.mxu0 0.0
    %1578 = vmatpush1.xpose.msra.mxu0 0.0
    %1579 = vmatprep.subr.mxu0 0.0
    %1580 = vmatpush1.xpose.msra.mxu0 0.0
    %1581 = vmatprep.subr.mxu0 0.0
    %1582 = vmatpush1.xpose.msra.mxu0 0.0
    %1583 = vmatprep.subr.mxu0 0.0
    %1584 = vmatpush1.xpose.msra.mxu0 0.0
    %1585 = vmatprep.subr.mxu0 0.0
    %1586 = vmatpush1.xpose.msra.mxu0 0.0
    %1587 = vmatprep.subr.mxu0 0.0
    %1588 = vmatpush1.xpose.msra.mxu0 0.0
    %1589 = vmatprep.subr.mxu0 0.0
    %1590 = vmatpush1.xpose.msra.mxu0 0.0
    %1591 = vmatprep.subr.mxu0 0.0
    %1592 = vmatpush1.xpose.msra.mxu0 0.0
    %1593 = vmatprep.subr.mxu0 0.0
    %1594 = vmatpush1.xpose.msra.mxu0 0.0
    %1595 = vmatprep.subr.mxu0 0.0
    %1596 = vmatpush1.xpose.msra.mxu0 0.0
    %1597 = vmatprep.subr.mxu0 0.0
    %1598 = vmatpush1.xpose.msra.mxu0 0.0
    %1599 = vmatprep.subr.mxu0 0.0
    %1600 = vmatpush1.xpose.msra.mxu0 0.0
    %1601 = vmatprep.subr.mxu0 0.0
    %1602 = vmatpush1.xpose.msra.mxu0 0.0
    %1603 = vmatprep.subr.mxu0 0.0
    %1604 = vmatpush1.xpose.msra.mxu0 0.0
    %1605 = vmatprep.subr.mxu0 0.0
    %1606 = vmatpush1.xpose.msra.mxu0 0.0
    %1607 = vmatprep.subr.mxu0 0.0
    %1608 = vmatpush1.xpose.msra.mxu0 0.0
    %1609 = vmatprep.subr.mxu0 0.0
    %1610 = vmatpush1.xpose.msra.mxu0 0.0
    %1611 = vmatprep.subr.mxu0 0.0
    %1612 = vmatpush1.xpose.msra.mxu0 0.0
    %1613 = vmatprep.subr.mxu0 0.0
    %1614 = vmatpush1.xpose.msra.mxu0 0.0
    %1615 = vmatprep.subr.mxu0 0.0
    %1616 = vmatpush1.xpose.msra.mxu0 0.0
    %1617 = vmatprep.subr.mxu0 0.0
    %1618 = vmatpush1.xpose.msra.mxu0 0.0
    %1619 = vmatprep.subr.mxu0 0.0
    %1620 = vmatpush1.xpose.msra.mxu0 0.0
    %1621 = vmatprep.subr.mxu0 0.0
    %1622 = vmatpush1.xpose.msra.mxu0 0.0
    %1623 = vmatprep.subr.mxu0 0.0
    %1624 = vmatpush1.xpose.msra.mxu0 0.0
    %1625 = vmatprep.subr.mxu0 0.0
    %1626 = vmatpush1.xpose.msra.mxu0 0.0
    %1627 = vmatprep.mubr.f32.mxu0 0.0
    %1628 = vmatmul.mubr.f32.gmra.mrb[0].mxu0 %v1555
    %v1629 = vpop.f32.mrb[0].mxu0
    %v1630 = vadd.f32 %v58, %v1629
    %v1631 = vpop.f32.mrb[0].mxu0
    %1632 = vmatprep.mubr.f32.mxu0 0.0
    %1633 = vmatmul.mubr.f32.gmra.mrb[0].mxu0 %v1557
    %v1634 = vpop.f32.mrb[0].mxu0
    %v1635 = vadd.f32 %v59, %v1634
    %v1636 = vpop.f32.mrb[0].mxu0
    %1637 = vdwg.mxu0
    %v1638 = vsel %vm333, %v1630, -inf
    %1639 = vmax.xlane.f32.xlu0 %v1638
    %v1640 = vpop.xlane.xlu0 %1639
    %v1641 = vsel %vm333, %v1635, -inf
    %1642 = vmax.xlane.f32.xlu0 %v1641
    %v1643 = vpop.xlane.xlu0 %1642
    %v1644 = vsub.f32 %v1630, %v1640
    %v1645 = vsub.f32 %v1635, %v1643
    %v1646 = vmul.f32 %v1644, 1.442695
    %v1647 = vpow.pop %v1646
    %v1648 = vmul.f32 %v1645, 1.442695
    %v1649 = vpow.pop %v1648
    %v1650 = vsel %vm333, %v1647, 0.0
    %1651 = vadd.xlane.f32.xlu0 %v1650
    %v1652 = vpop.xlane.xlu0 %1651
    %v1653 = vsel %vm333, %v1649, 0.0
    %1654 = vadd.xlane.f32.xlu0 %v1653
    %v1655 = vpop.xlane.xlu0 %1654
    %v1656 = vrcp.pop %v1652
    %v1657 = vrcp.pop %v1655
    %v1658 = vmul.f32 %v1647, %v1656
    %v1659 = vmul.f32 %v1649, %v1657
    %v1660 = vmax.f32 %v1545, %v1658
    %v1661 = vmax.f32 %v1546, %v1659
    %1662 = vrot.lane.b32.xlu0 %v143, 40
    %v1663 = vpop.permute.xlu0 %1662
    %1664 = vrot.lane.b32.xlu0 %v148, 40
    %v1665 = vpop.permute.xlu0 %1664
    %v1669 = vsel %vm333, %v1660, 0
    %v1672 = vsel %vm333, %v1661, 0
    %1674 = vmatprep.subr.mxu0 0.0
    %1675 = vmatpush1.msra.mxu0 %v1663
    %1676 = vmatprep.subr.mxu0 0.0
    %1677 = vmatpush1.msra.mxu0 %v1665
    %1678 = vmatprep.subr.mxu0 0.0
    %1679 = vmatpush1.msra.mxu0 0.0
    %1680 = vmatprep.subr.mxu0 0.0
    %1681 = vmatpush1.msra.mxu0 0.0
    %1682 = vmatprep.subr.mxu0 0.0
    %1683 = vmatpush1.msra.mxu0 0.0
    %1684 = vmatprep.subr.mxu0 0.0
    %1685 = vmatpush1.msra.mxu0 0.0
    %1686 = vmatprep.subr.mxu0 0.0
    %1687 = vmatpush1.msra.mxu0 0.0
    %1688 = vmatprep.subr.mxu0 0.0
    %1689 = vmatpush1.msra.mxu0 0.0
    %1690 = vmatprep.subr.mxu0 0.0
    %1691 = vmatpush1.msra.mxu0 0.0
    %1692 = vmatprep.subr.mxu0 0.0
    %1693 = vmatpush1.msra.mxu0 0.0
    %1694 = vmatprep.subr.mxu0 0.0
    %1695 = vmatpush1.msra.mxu0 0.0
    %1696 = vmatprep.subr.mxu0 0.0
    %1697 = vmatpush1.msra.mxu0 0.0
    %1698 = vmatprep.subr.mxu0 0.0
    %1699 = vmatpush1.msra.mxu0 0.0
    %1700 = vmatprep.subr.mxu0 0.0
    %1701 = vmatpush1.msra.mxu0 0.0
    %1702 = vmatprep.subr.mxu0 0.0
    %1703 = vmatpush1.msra.mxu0 0.0
    %1704 = vmatprep.subr.mxu0 0.0
    %1705 = vmatpush1.msra.mxu0 0.0
    %1706 = vmatprep.subr.mxu0 0.0
    %1707 = vmatpush1.msra.mxu0 0.0
    %1708 = vmatprep.subr.mxu0 0.0
    %1709 = vmatpush1.msra.mxu0 0.0
    %1710 = vmatprep.subr.mxu0 0.0
    %1711 = vmatpush1.msra.mxu0 0.0
    %1712 = vmatprep.subr.mxu0 0.0
    %1713 = vmatpush1.msra.mxu0 0.0
    %1714 = vmatprep.subr.mxu0 0.0
    %1715 = vmatpush1.msra.mxu0 0.0
    %1716 = vmatprep.subr.mxu0 0.0
    %1717 = vmatpush1.msra.mxu0 0.0
    %1718 = vmatprep.subr.mxu0 0.0
    %1719 = vmatpush1.msra.mxu0 0.0
    %1720 = vmatprep.subr.mxu0 0.0
    %1721 = vmatpush1.msra.mxu0 0.0
    %1722 = vmatprep.subr.mxu0 0.0
    %1723 = vmatpush1.msra.mxu0 0.0
    %1724 = vmatprep.subr.mxu0 0.0
    %1725 = vmatpush1.msra.mxu0 0.0
    %1726 = vmatprep.subr.mxu0 0.0
    %1727 = vmatpush1.msra.mxu0 0.0
    %1728 = vmatprep.subr.mxu0 0.0
    %1729 = vmatpush1.msra.mxu0 0.0
    %1730 = vmatprep.subr.mxu0 0.0
    %1731 = vmatpush1.msra.mxu0 0.0
    %1732 = vmatprep.subr.mxu0 0.0
    %1733 = vmatpush1.msra.mxu0 0.0
    %1734 = vmatprep.subr.mxu0 0.0
    %1735 = vmatpush1.msra.mxu0 0.0
    %1736 = vmatprep.subr.mxu0 0.0
    %1737 = vmatpush1.msra.mxu0 0.0
    %1738 = vmatprep.mubr.f32.mxu0 0.0
    %1739 = vmatmul.mubr.f32.gmra.mrb[0].mxu0 %v1669
    %v1740 = vpop.f32.mrb[0].mxu0
    %v1741 = vadd.f32 0.0, %v1740
    %v1742 = vpop.f32.mrb[0].mxu0
    %1743 = vmatprep.mubr.f32.mxu0 0.0
    %1744 = vmatmul.mubr.f32.gmra.mrb[0].mxu0 %v1672
    %v1745 = vpop.f32.mrb[0].mxu0
    %v1746 = vadd.f32 0.0, %v1745
    %v1747 = vpop.f32.mrb[0].mxu0
    %1748 = vdwg.mxu0
    %v1749 = vld [vmem:[#allocation5 + $0x58] sm:$0xff]
    %v1751 = vsel %vm249, %v1741, 0
    %v1754 = vsel %vm249, %v1746, 0
    %1756 = vmatprep.subr.mxu0 0.0
    %1757 = vmatpush1.msra.mxu0 %v1749
    %1758 = vmatprep.subr.mxu0 0.0
    %1759 = vmatpush1.msra.mxu0 0.0
    %1760 = vmatprep.subr.mxu0 0.0
    %1761 = vmatpush1.msra.mxu0 0.0
    %1762 = vmatprep.subr.mxu0 0.0
    %1763 = vmatpush1.msra.mxu0 0.0
    %1764 = vmatprep.subr.mxu0 0.0
    %1765 = vmatpush1.msra.mxu0 0.0
    %1766 = vmatprep.subr.mxu0 0.0
    %1767 = vmatpush1.msra.mxu0 0.0
    %1768 = vmatprep.subr.mxu0 0.0
    %1769 = vmatpush1.msra.mxu0 0.0
    %1770 = vmatprep.subr.mxu0 0.0
    %1771 = vmatpush1.msra.mxu0 0.0
    %1772 = vmatprep.subr.mxu0 0.0
    %1773 = vmatpush1.msra.mxu0 0.0
    %1774 = vmatprep.subr.mxu0 0.0
    %1775 = vmatpush1.msra.mxu0 0.0
    %1776 = vmatprep.subr.mxu0 0.0
    %1777 = vmatpush1.msra.mxu0 0.0
    %1778 = vmatprep.subr.mxu0 0.0
    %1779 = vmatpush1.msra.mxu0 0.0
    %1780 = vmatprep.subr.mxu0 0.0
    %1781 = vmatpush1.msra.mxu0 0.0
    %1782 = vmatprep.subr.mxu0 0.0
    %1783 = vmatpush1.msra.mxu0 0.0
    %1784 = vmatprep.subr.mxu0 0.0
    %1785 = vmatpush1.msra.mxu0 0.0
    %1786 = vmatprep.subr.mxu0 0.0
    %1787 = vmatpush1.msra.mxu0 0.0
    %1788 = vmatprep.subr.mxu0 0.0
    %1789 = vmatpush1.msra.mxu0 0.0
    %1790 = vmatprep.subr.mxu0 0.0
    %1791 = vmatpush1.msra.mxu0 0.0
    %1792 = vmatprep.subr.mxu0 0.0
    %1793 = vmatpush1.msra.mxu0 0.0
    %1794 = vmatprep.subr.mxu0 0.0
    %1795 = vmatpush1.msra.mxu0 0.0
    %1796 = vmatprep.subr.mxu0 0.0
    %1797 = vmatpush1.msra.mxu0 0.0
    %1798 = vmatprep.subr.mxu0 0.0
    %1799 = vmatpush1.msra.mxu0 0.0
    %1800 = vmatprep.subr.mxu0 0.0
    %1801 = vmatpush1.msra.mxu0 0.0
    %1802 = vmatprep.subr.mxu0 0.0
    %1803 = vmatpush1.msra.mxu0 0.0
    %1804 = vmatprep.subr.mxu0 0.0
    %1805 = vmatpush1.msra.mxu0 0.0
    %1806 = vmatprep.subr.mxu0 0.0
    %1807 = vmatpush1.msra.mxu0 0.0
    %1808 = vmatprep.subr.mxu0 0.0
    %1809 = vmatpush1.msra.mxu0 0.0
    %1810 = vmatprep.subr.mxu0 0.0
    %1811 = vmatpush1.msra.mxu0 0.0
    %1812 = vmatprep.subr.mxu0 0.0
    %1813 = vmatpush1.msra.mxu0 0.0
    %1814 = vmatprep.subr.mxu0 0.0
    %1815 = vmatpush1.msra.mxu0 0.0
    %1816 = vmatprep.subr.mxu0 0.0
    %1817 = vmatpush1.msra.mxu0 0.0
    %1818 = vmatprep.subr.mxu0 0.0
    %1819 = vmatpush1.msra.mxu0 0.0
    %1820 = vmatprep.mubr.f32.mxu0 0.0
    %1821 = vmatmul.mubr.f32.gmra.mrb[0].mxu0 %v1751
    %v1822 = vpop.f32.mrb[0].mxu0
    %v1823 = vadd.f32 0.0, %v1822
    %v1824 = vpop.f32.mrb[0].mxu0
    %1825 = vmatprep.mubr.f32.mxu0 0.0
    %1826 = vmatmul.mubr.f32.gmra.mrb[0].mxu0 %v1754
    %v1827 = vpop.f32.mrb[0].mxu0
    %v1828 = vadd.f32 0.0, %v1827
    %v1829 = vpop.f32.mrb[0].mxu0
    %1830 = vdwg.mxu0
    %v1831 = vadd.f32 %v1432, %v1823
    %v1832 = vadd.f32 %v1433, %v1828
    %v1833 = vld [vmem:[#allocation7 + $0x2] sm:$0x1]
    %v1834 = vld [vmem:[#allocation7 + $0x3] sm:$0x1]
    %v1835 = vld [vmem:[#allocation7 + $0x4] sm:$0x1]
    %v1836 = vld [vmem:[#allocation7 + $0x5] sm:$0x1]
    %v1837 = vld [vmem:[#allocation7 + $0x6] sm:$0x1]
    %v1838 = vld [vmem:[#allocation7 + $0x7] sm:$0x1]
    %v1839 = vld [vmem:[#allocation7 + $0x8] sm:$0x1]
    %v1840 = vadd.f32 %v56, %v1831
    %v1841 = vadd.f32 %v57, %v1832
    %v1842 = vlaneseq
    %v1843 = vshrl.u32 %v1842, 7
    %v1844 = vsub.s32 0, %v1843
    %v1845 = vrot.slane %v1833, %v1844
    %v1846 = vadd.f32 %v1840, %v1845
    %v1847 = vadd.f32 %v1841, %v1845
    %v1848 = vsel %vm69, %v1846, 0.0
    %1849 = vadd.xlane.f32.xlu0 %v1848
    %v1850 = vpop.xlane.xlu0 %1849
    %v1851 = vsel %vm69, %v1847, 0.0
    %1852 = vadd.xlane.f32.xlu0 %v1851
    %v1853 = vpop.xlane.xlu0 %1852
    %v1854 = vrcp.pop 32.0
    %v1855 = vmul.f32 %v1850, %v1854
    %v1856 = vmul.f32 %v1853, %v1854
    %v1857 = vsub.f32 %v1846, %v1855
    %v1858 = vsub.f32 %v1847, %v1856
    %v1859 = vmul.f32 %v1857, %v1857
    %v1860 = vmul.f32 %v1858, %v1858
    %v1861 = vsel %vm69, %v1859, 0.0
    %1862 = vadd.xlane.f32.xlu0 %v1861
    %v1863 = vpop.xlane.xlu0 %1862
    %v1864 = vsel %vm69, %v1860, 0.0
    %1865 = vadd.xlane.f32.xlu0 %v1864
    %v1866 = vpop.xlane.xlu0 %1865
    %v1867 = vmul.f32 %v1863, %v1854
    %v1868 = vmul.f32 %v1866, %v1854
    %v1869 = vadd.f32 %v1867, 1e-05
    %v1870 = vadd.f32 %v1868, 1e-05
    %v1871 = vrsqrt.pop %v1869
    %v1872 = vrsqrt.pop %v1870
    %v1873 = vmul.f32 %v1857, %v1871
    %v1874 = vmul.f32 %v1858, %v1872
    %v1875 = vlaneseq
    %v1876 = vshrl.u32 %v1875, 7
    %v1877 = vsub.s32 0, %v1876
    %v1878 = vrot.slane %v1836, %v1877
    %v1879 = vmul.f32 %v1873, %v1878
    %v1880 = vmul.f32 %v1874, %v1878
    %v1881 = vlaneseq
    %v1882 = vshrl.u32 %v1881, 7
    %v1883 = vsub.s32 0, %v1882
    %v1884 = vrot.slane %v1837, %v1883
    %v1885 = vadd.f32 %v1879, %v1884
    %v1886 = vadd.f32 %v1880, %v1884
    %v1887 = vld [vmem:[#allocation5 + $0x60] sm:$0xff]
    %v1888 = vld [vmem:[#allocation5 + $0x68] sm:$0xff]
    %v1889 = vld [vmem:[#allocation5 + $0x70] sm:$0xff]
    %v1890 = vld [vmem:[#allocation5 + $0x78] sm:$0xff]
    %v1891 = vlaneseq
    %v1892 = vshrl.u32 %v1891, 7
    %v1893 = vsub.s32 0, %v1892
    %v1894 = vrot.slane %v1834, %v1893
    %v1896 = vsel %vm69, %v1885, 0
    %v1899 = vsel %vm69, %v1886, 0
    %1901 = vmatprep.subr.mxu0 0.0
    %1902 = vmatpush1.msra.mxu0 %v1887
    %1903 = vmatprep.subr.mxu0 0.0
    %1904 = vmatpush1.msra.mxu0 %v1888
    %1905 = vmatprep.subr.mxu0 0.0
    %1906 = vmatpush1.msra.mxu0 %v1889
    %1907 = vmatprep.subr.mxu0 0.0
    %1908 = vmatpush1.msra.mxu0 %v1890
    %1909 = vmatprep.subr.mxu0 0.0
    %1910 = vmatpush1.msra.mxu0 0.0
    %1911 = vmatprep.subr.mxu0 0.0
    %1912 = vmatpush1.msra.mxu0 0.0
    %1913 = vmatprep.subr.mxu0 0.0
    %1914 = vmatpush1.msra.mxu0 0.0
    %1915 = vmatprep.subr.mxu0 0.0
    %1916 = vmatpush1.msra.mxu0 0.0
    %1917 = vmatprep.subr.mxu0 0.0
    %1918 = vmatpush1.msra.mxu0 0.0
    %1919 = vmatprep.subr.mxu0 0.0
    %1920 = vmatpush1.msra.mxu0 0.0
    %1921 = vmatprep.subr.mxu0 0.0
    %1922 = vmatpush1.msra.mxu0 0.0
    %1923 = vmatprep.subr.mxu0 0.0
    %1924 = vmatpush1.msra.mxu0 0.0
    %1925 = vmatprep.subr.mxu0 0.0
    %1926 = vmatpush1.msra.mxu0 0.0
    %1927 = vmatprep.subr.mxu0 0.0
    %1928 = vmatpush1.msra.mxu0 0.0
    %1929 = vmatprep.subr.mxu0 0.0
    %1930 = vmatpush1.msra.mxu0 0.0
    %1931 = vmatprep.subr.mxu0 0.0
    %1932 = vmatpush1.msra.mxu0 0.0
    %1933 = vmatprep.subr.mxu0 0.0
    %1934 = vmatpush1.msra.mxu0 0.0
    %1935 = vmatprep.subr.mxu0 0.0
    %1936 = vmatpush1.msra.mxu0 0.0
    %1937 = vmatprep.subr.mxu0 0.0
    %1938 = vmatpush1.msra.mxu0 0.0
    %1939 = vmatprep.subr.mxu0 0.0
    %1940 = vmatpush1.msra.mxu0 0.0
    %1941 = vmatprep.subr.mxu0 0.0
    %1942 = vmatpush1.msra.mxu0 0.0
    %1943 = vmatprep.subr.mxu0 0.0
    %1944 = vmatpush1.msra.mxu0 0.0
    %1945 = vmatprep.subr.mxu0 0.0
    %1946 = vmatpush1.msra.mxu0 0.0
    %1947 = vmatprep.subr.mxu0 0.0
    %1948 = vmatpush1.msra.mxu0 0.0
    %1949 = vmatprep.subr.mxu0 0.0
    %1950 = vmatpush1.msra.mxu0 0.0
    %1951 = vmatprep.subr.mxu0 0.0
    %1952 = vmatpush1.msra.mxu0 0.0
    %1953 = vmatprep.subr.mxu0 0.0
    %1954 = vmatpush1.msra.mxu0 0.0
    %1955 = vmatprep.subr.mxu0 0.0
    %1956 = vmatpush1.msra.mxu0 0.0
    %1957 = vmatprep.subr.mxu0 0.0
    %1958 = vmatpush1.msra.mxu0 0.0
    %1959 = vmatprep.subr.mxu0 0.0
    %1960 = vmatpush1.msra.mxu0 0.0
    %1961 = vmatprep.subr.mxu0 0.0
    %1962 = vmatpush1.msra.mxu0 0.0
    %1963 = vmatprep.subr.mxu0 0.0
    %1964 = vmatpush1.msra.mxu0 0.0
    %1965 = vmatprep.mubr.f32.mxu0 0.0
    %1966 = vmatmul.mubr.f32.gmra.mrb[0].mxu0 %v1896
    %v1967 = vpop.f32.mrb[0].mxu0
    %v1968 = vadd.f32 %v1894, %v1967
    %v1969 = vpop.f32.mrb[0].mxu0
    %1970 = vmatprep.mubr.f32.mxu0 0.0
    %1971 = vmatmul.mubr.f32.gmra.mrb[0].mxu0 %v1899
    %v1972 = vpop.f32.mrb[0].mxu0
    %v1973 = vadd.f32 %v1894, %v1972
    %v1974 = vpop.f32.mrb[0].mxu0
    %1975 = vdwg.mxu0
    %v1976 = vmul.f32 %v1968, 0.5
    %v1977 = vmul.f32 %v1973, 0.5
    %v1978 = vrcp.pop 1.4142135
    %v1979 = vmul.f32 %v1968, %v1978
    %v1980 = vmul.f32 %v1973, %v1978
    %v1981 = verf.f32.pop %v1979
    %v1982 = verf.f32.pop %v1980
    %v1983 = vadd.f32 %v1981, 1.0
    %v1984 = vadd.f32 %v1982, 1.0
    %v1985 = vmul.f32 %v1976, %v1983
    %v1986 = vmul.f32 %v1977, %v1984
    %v1987 = vld [vmem:[#allocation5 + $0x80] sm:$0xff]
    %v1988 = vld [vmem:[#allocation5 + $0x88] sm:$0xff]
    %v1989 = vld [vmem:[#allocation5 + $0x90] sm:$0xff]
    %v1990 = vld [vmem:[#allocation5 + $0x98] sm:$0xff]
    %v1991 = vlaneseq
    %v1992 = vshrl.u32 %v1991, 7
    %v1993 = vsub.s32 0, %v1992
    %v1994 = vrot.slane %v1835, %v1993
    %v1996 = vsel %vm69, %v1985, 0
    %v1999 = vsel %vm69, %v1986, 0
    %2001 = vmatprep.subr.mxu0 0.0
    %2002 = vmatpush1.msra.mxu0 %v1987
    %2003 = vmatprep.subr.mxu0 0.0
    %2004 = vmatpush1.msra.mxu0 %v1988
    %2005 = vmatprep.subr.mxu0 0.0
    %2006 = vmatpush1.msra.mxu0 %v1989
    %2007 = vmatprep.subr.mxu0 0.0
    %2008 = vmatpush1.msra.mxu0 %v1990
    %2009 = vmatprep.subr.mxu0 0.0
    %2010 = vmatpush1.msra.mxu0 0.0
    %2011 = vmatprep.subr.mxu0 0.0
    %2012 = vmatpush1.msra.mxu0 0.0
    %2013 = vmatprep.subr.mxu0 0.0
    %2014 = vmatpush1.msra.mxu0 0.0
    %2015 = vmatprep.subr.mxu0 0.0
    %2016 = vmatpush1.msra.mxu0 0.0
    %2017 = vmatprep.subr.mxu0 0.0
    %2018 = vmatpush1.msra.mxu0 0.0
    %2019 = vmatprep.subr.mxu0 0.0
    %2020 = vmatpush1.msra.mxu0 0.0
    %2021 = vmatprep.subr.mxu0 0.0
    %2022 = vmatpush1.msra.mxu0 0.0
    %2023 = vmatprep.subr.mxu0 0.0
    %2024 = vmatpush1.msra.mxu0 0.0
    %2025 = vmatprep.subr.mxu0 0.0
    %2026 = vmatpush1.msra.mxu0 0.0
    %2027 = vmatprep.subr.mxu0 0.0
    %2028 = vmatpush1.msra.mxu0 0.0
    %2029 = vmatprep.subr.mxu0 0.0
    %2030 = vmatpush1.msra.mxu0 0.0
    %2031 = vmatprep.subr.mxu0 0.0
    %2032 = vmatpush1.msra.mxu0 0.0
    %2033 = vmatprep.subr.mxu0 0.0
    %2034 = vmatpush1.msra.mxu0 0.0
    %2035 = vmatprep.subr.mxu0 0.0
    %2036 = vmatpush1.msra.mxu0 0.0
    %2037 = vmatprep.subr.mxu0 0.0
    %2038 = vmatpush1.msra.mxu0 0.0
    %2039 = vmatprep.subr.mxu0 0.0
    %2040 = vmatpush1.msra.mxu0 0.0
    %2041 = vmatprep.subr.mxu0 0.0
    %2042 = vmatpush1.msra.mxu0 0.0
    %2043 = vmatprep.subr.mxu0 0.0
    %2044 = vmatpush1.msra.mxu0 0.0
    %2045 = vmatprep.subr.mxu0 0.0
    %2046 = vmatpush1.msra.mxu0 0.0
    %2047 = vmatprep.subr.mxu0 0.0
    %2048 = vmatpush1.msra.mxu0 0.0
    %2049 = vmatprep.subr.mxu0 0.0
    %2050 = vmatpush1.msra.mxu0 0.0
    %2051 = vmatprep.subr.mxu0 0.0
    %2052 = vmatpush1.msra.mxu0 0.0
    %2053 = vmatprep.subr.mxu0 0.0
    %2054 = vmatpush1.msra.mxu0 0.0
    %2055 = vmatprep.subr.mxu0 0.0
    %2056 = vmatpush1.msra.mxu0 0.0
    %2057 = vmatprep.subr.mxu0 0.0
    %2058 = vmatpush1.msra.mxu0 0.0
    %2059 = vmatprep.subr.mxu0 0.0
    %2060 = vmatpush1.msra.mxu0 0.0
    %2061 = vmatprep.subr.mxu0 0.0
    %2062 = vmatpush1.msra.mxu0 0.0
    %2063 = vmatprep.subr.mxu0 0.0
    %2064 = vmatpush1.msra.mxu0 0.0
    %2065 = vmatprep.mubr.f32.mxu0 0.0
    %2066 = vmatmul.mubr.f32.gmra.mrb[0].mxu0 %v1996
    %v2067 = vpop.f32.mrb[0].mxu0
    %v2068 = vadd.f32 %v1994, %v2067
    %v2069 = vpop.f32.mrb[0].mxu0
    %2070 = vmatprep.mubr.f32.mxu0 0.0
    %2071 = vmatmul.mubr.f32.gmra.mrb[0].mxu0 %v1999
    %v2072 = vpop.f32.mrb[0].mxu0
    %v2073 = vadd.f32 %v1994, %v2072
    %v2074 = vpop.f32.mrb[0].mxu0
    %2075 = vdwg.mxu0
    %v2076 = vadd.f32 %v1885, %v2068
    %v2077 = vadd.f32 %v1886, %v2073
    %v2078 = vsel %vm69, %v2076, 0.0
    %2079 = vadd.xlane.f32.xlu0 %v2078
    %v2080 = vpop.xlane.xlu0 %2079
    %v2081 = vsel %vm69, %v2077, 0.0
    %2082 = vadd.xlane.f32.xlu0 %v2081
    %v2083 = vpop.xlane.xlu0 %2082
    %v2084 = vmul.f32 %v2080, %v1854
    %v2085 = vmul.f32 %v2083, %v1854
    %v2086 = vsub.f32 %v2076, %v2084
    %v2087 = vsub.f32 %v2077, %v2085
    %v2088 = vmul.f32 %v2086, %v2086
    %v2089 = vmul.f32 %v2087, %v2087
    %v2090 = vsel %vm69, %v2088, 0.0
    %2091 = vadd.xlane.f32.xlu0 %v2090
    %v2092 = vpop.xlane.xlu0 %2091
    %v2093 = vsel %vm69, %v2089, 0.0
    %2094 = vadd.xlane.f32.xlu0 %v2093
    %v2095 = vpop.xlane.xlu0 %2094
    %v2096 = vmul.f32 %v2092, %v1854
    %v2097 = vmul.f32 %v2095, %v1854
    %v2098 = vadd.f32 %v2096, 1e-05
    %v2099 = vadd.f32 %v2097, 1e-05
    %v2100 = vrsqrt.pop %v2098
    %v2101 = vrsqrt.pop %v2099
    %v2102 = vmul.f32 %v2086, %v2100
    %v2103 = vmul.f32 %v2087, %v2101
    %v2104 = vlaneseq
    %v2105 = vshrl.u32 %v2104, 7
    %v2106 = vsub.s32 0, %v2105
    %v2107 = vrot.slane %v1838, %v2106
    %v2108 = vmul.f32 %v2102, %v2107
    %v2109 = vmul.f32 %v2103, %v2107
    %v2110 = vlaneseq
    %v2111 = vshrl.u32 %v2110, 7
    %v2112 = vsub.s32 0, %v2111
    %v2113 = vrot.slane %v1839, %v2112
    %v2114 = vadd.f32 %v2108, %v2113
    %v2115 = vadd.f32 %v2109, %v2113
    %2116 = vst.msk [vmem:[#allocation8] sm:$0xff] %vm69, %v2114
    %2117 = vst.msk [vmem:[#allocation8 + $0x8] sm:$0xff] %vm69, %v2115
    // Predicated region
    $region26: #{tpu_custom_call.1} parent=1 // pred_check
      _
    $region27: #{tpu_custom_call.1} parent=1 // pred_check_branch
      %2119 = sbr.rel (0) target = $region29
    $region28: #{tpu_custom_call.1} parent=1 // pred_region
      %s2121 = ssub.s32 256, 256
      %2122 = vsyncadd [#allocation4], %s2121
      %s2123 = sshll.u32 [#allocation8], 4
      %s2124 = int_to_ptr.vmem [resolvable:$true] %s2123
      %2129 = dma.vmem_to_hbm [thread:$0]  %s2124, 256, %s3, [#allocation4], 128, 128, 8
    $region29: #{tpu_custom_call.1} parent=1 // pred_fallthru
      _
    // Predicated region
    $region30: #{tpu_custom_call.1} parent=1 // pred_check
      _
    $region31: #{tpu_custom_call.1} parent=1 // pred_check_branch
      %2131 = sbr.rel (0) target = $region33
    $region32: #{tpu_custom_call.1} parent=1 // pred_region
      %2132 = dma.done [#allocation4], 256
    $region33: #{tpu_custom_call.1} parent=1 // pred_fallthru
      _
    %2133 = vsyncpa [#allocation3], 1
    %2134 = vsyncpa [#allocation6], 1
    %2135 = vsyncpa [#allocation4], 1

</llo_original>
